<compile_context>
chip_gen: v7x
topology: tpu7x:2x2x1
jax: 0.10.0
libtpu: 0.0.40
codegen_flags: <defaults>
</compile_context>

<pallas_src>
import functools

import jax
import jax.numpy as jnp
from jax.experimental import pallas as pl
from jax.experimental.pallas import tpu as pltpu


# ---------------------------------------------------------------------------
# Relative spatial feature (exact port of get_relative_spatial_feature)
# ---------------------------------------------------------------------------
def get_relative_spatial_feature(w, h, zero_center=True):
    w, h = int(w), int(h)
    d_sq = h * w
    o = jnp.arange(d_sq)
    i = jnp.arange(d_sq)
    o_h = (o // w)[:, None]
    o_w = (o % w)[:, None]
    i_h = (i // w)[None, :]
    i_w = (i % w)[None, :]
    f0 = (o_h - i_h).reshape(-1)   # index = o * d_sq + i (i fastest) -> matches torch loop
    f1 = (o_w - i_w).reshape(-1)
    feat = jnp.stack([f0, f1], axis=0).astype(jnp.float32)[None]  # [1, 2, d_sq * d_sq]
    if zero_center:
        feat = feat - feat.mean()
    return feat


def _act(x, use_tanh):
    return jnp.tanh(x) if use_tanh else jnp.maximum(x, 0.0)


# ---------------------------------------------------------------------------
# Main kernel: decomposed first g-layer + g-MLP over a tile of pairs + pooled sum
# ---------------------------------------------------------------------------
def _g_sum_kernel(u_ref, v_ref, rp_ref, wg2_ref, bg2_ref, wg3_ref, bg3_ref,
                  emb_ref, acc_ref, *, use_tanh, n_objects, o_tile, sublane_acc):
    t = pl.program_id(1)

    @pl.when(t == 0)
    def _():
        acc_ref[...] = jnp.zeros_like(acc_ref)

    u = u_ref[0]          # (N,  H1)  contribution of the "i" object (xi part of wg1)
    v = v_ref[0]          # (TO, H1)  contribution of the "o" object (xj part of wg1)
    rp = rp_ref[...]      # (TO*N, H1) relative-position projection (+ bg1 folded in)

    # First g layer, built in-register via broadcast adds (no pair tensor in HBM).
    h = rp.reshape(o_tile, n_objects, -1) + u[None, :, :] + v[:, None, :]
    h = _act(h, use_tanh).reshape(o_tile * n_objects, -1)          # (TP, H1)

    # Remaining g layers (nonlinear=True -> activation on the output layer too).
    h = _act(jnp.dot(h, wg2_ref[...], preferred_element_type=jnp.float32)
             + bg2_ref[...], use_tanh)
    g = _act(jnp.dot(h, wg3_ref[...], preferred_element_type=jnp.float32)
             + bg3_ref[...], use_tanh)

    tp = o_tile * n_objects
    if sublane_acc:
        # Per-sublane partial sums (plain VPU adds); collapse once in the epilogue.
        acc_ref[...] += jnp.sum(g.reshape(tp // 8, 8, -1), axis=0)
    else:
        acc_ref[...] += jnp.sum(g, axis=0, keepdims=True)

    @pl.when(t == pl.num_programs(1) - 1)
    def _():
        emb_ref[...] = jnp.sum(acc_ref[...], axis=0,
                               keepdims=True)[None].astype(emb_ref.dtype)


# ---------------------------------------------------------------------------
# Tiny second kernel: f-MLP batched over the whole batch in one pass
# ---------------------------------------------------------------------------
def _f_kernel(emb_ref, wf1_ref, bf1_ref, wf2_ref, bf2_ref, out_ref, *, use_tanh):
    h = _act(jnp.dot(emb_ref[...], wf1_ref[...], preferred_element_type=jnp.float32)
             + bf1_ref[...], use_tanh)
    out_ref[...] = (jnp.dot(h, wf2_ref[...], preferred_element_type=jnp.float32)
                    + bf2_ref[...]).astype(out_ref.dtype)


# ---------------------------------------------------------------------------
# Wrapper
# ---------------------------------------------------------------------------
def relation_network_forward(x, params, num_objects_list, *, use_tanh=False,
                             pair_rows=2048):
    """x: [B, C, H, W] (NCHW).  Returns [B, output_dim_f]."""
    B, C, H, W = x.shape
    assert list(num_objects_list) == [H, W]
    n = H * W
    n_pairs = n * n

    wg1, bg1, wg2, bg2, wg3, bg3, wf1, bf1, wf2, bf2 = params
    h1d = wg1.shape[1]
    h2d = wg2.shape[1]
    dg = wg3.shape[1]
    df = wf2.shape[1]

    # --- decomposed first g-layer: wg1 = [W_xi ; W_xj ; W_rel] along its input dim ---
    w_xi = wg1[:C]                  # multiplies xi = x[:, :, i]
    w_xj = wg1[C:2 * C]             # multiplies xj = x[:, :, o]
    w_rel = wg1[2 * C:]             # multiplies the relative-position feature

    # Tiny per-object projections (O(B*N*C*H1)), computed once in XLA.
    x_objs = jnp.transpose(x.reshape(B, C, n), (0, 2, 1))            # (B, N, C)
    u = jnp.einsum('bnc,ch->bnh', x_objs, w_xi)                      # (B, N, H1)
    v = jnp.einsum('bnc,ch->bnh', x_objs, w_xj)                      # (B, N, H1)

    # Batch-independent relative-position projection; bg1 folded in.
    rel = get_relative_spatial_feature(num_objects_list[0], num_objects_list[1])
    relproj = jnp.dot(rel[0].T, w_rel) + bg1                         # (N*N, H1)

    # --- tile selection: each grid step handles o_tile * N pairs (full o-rows) ---
    target = max(1, pair_rows // n)
    if target >= n:
        o_tile = n
    else:
        o_tile = max(d for d in range(1, n + 1) if n % d == 0 and d <= target)
    n_o_tiles = n // o_tile
    tile_rows = o_tile * n
    sublane_acc = (tile_rows % 8 == 0)
    acc_shape = (8, dg) if sublane_acc else (1, dg)

    # Rough VMEM budget (double-buffered inputs + live activations), clamped so it
    # stays safe on v7x (64 MiB physical) while covering large tiles on v5e/v6e.
    est = 4 * (2 * (n * h1d + o_tile * h1d + tile_rows * h1d)
               + 3 * tile_rows * max(h1d, h2d, dg)
               + 4 * (wg2.size + wg3.size))
    vmem_limit = int(min(max(4 * est, 16 * 2**20), 48 * 2**20))

    kernel = functools.partial(_g_sum_kernel, use_tanh=use_tanh,
                               n_objects=n, o_tile=o_tile, sublane_acc=sublane_acc)

    full = lambda a: pl.BlockSpec(a.shape, lambda b, t: (0,) * a.ndim)

    emb = pl.pallas_call(
        kernel,
        out_shape=jax.ShapeDtypeStruct((B, 1, dg), jnp.float32),
        grid_spec=pltpu.PrefetchScalarGridSpec(
            num_scalar_prefetch=0,
            grid=(B, n_o_tiles),
            in_specs=[
                pl.BlockSpec((1, n, h1d), lambda b, t: (b, 0, 0)),        # u (full N)
                pl.BlockSpec((1, o_tile, h1d), lambda b, t: (b, t, 0)),   # v (o-tile)
                pl.BlockSpec((tile_rows, h1d), lambda b, t: (t, 0)),      # relproj tile
                full(wg2), full(bg2), full(wg3), full(bg3),
            ],
            out_specs=pl.BlockSpec((1, 1, dg), lambda b, t: (b, 0, 0)),
            scratch_shapes=[pltpu.VMEM(acc_shape, jnp.float32)],
        ),
        compiler_params=pltpu.CompilerParams(
            dimension_semantics=("parallel", "arbitrary"),
            vmem_limit_bytes=vmem_limit),
    )(u, v, relproj, wg2, bg2, wg3, bg3)

    emb = emb.reshape(B, dg)

    # f-MLP batched over all B in one tiny pallas_call (single lane-dense pass).
    out = pl.pallas_call(
        functools.partial(_f_kernel, use_tanh=use_tanh),
        out_shape=jax.ShapeDtypeStruct((B, df), jnp.float32),
    )(emb, wf1, bf1, wf2, bf2)
    return out


# ---------------------------------------------------------------------------
# Pure-JAX reference (same math as the PyTorch forward) for correctness checking
# ---------------------------------------------------------------------------
def relation_network_reference(x, params, num_objects_list, *, use_tanh=False):
    B, C, H, W = x.shape
    n = H * W
    x_flat = x.reshape(B, C, n)
    xi = jnp.tile(x_flat, (1, 1, n))
    xj = jnp.repeat(x_flat, n, axis=2)
    rel = jnp.broadcast_to(
        get_relative_spatial_feature(num_objects_list[0], num_objects_list[1]),
        (B, 2, n * n))
    pair = jnp.transpose(jnp.concatenate([xi, xj, rel], axis=1), (0, 2, 1))
    pair = pair.reshape(-1, pair.shape[-1])
    wg1, bg1, wg2, bg2, wg3, bg3, wf1, bf1, wf2, bf2 = params
    act = (lambda v: jnp.tanh(v)) if use_tanh else (lambda v: jnp.maximum(v, 0.0))
    h = act(pair @ wg1 + bg1)
    h = act(h @ wg2 + bg2)
    g = act(h @ wg3 + bg3)
    emb = jnp.sum(g.reshape(B, n * n, -1), axis=1)
    hf = act(emb @ wf1 + bf1)
    return hf @ wf2 + bf2


# ---------------------------------------------------------------------------
# Deterministic parameter init (shapes follow the module's __init__)
# ---------------------------------------------------------------------------
def init_params(key, obj_fdim, num_objects_list, hidden_dims_g, output_dim_g,
                hidden_dims_f, output_dim_f):
    input_dim_g = 2 * obj_fdim + len(num_objects_list)   # relative_position_encoding=True
    input_dim_f = output_dim_g
    dims_g = [input_dim_g] + list(hidden_dims_g) + [output_dim_g]
    dims_f = [input_dim_f] + list(hidden_dims_f) + [output_dim_f]

    params = []
    for din, dout in zip(dims_g[:-1], dims_g[1:]):
        key, k1 = jax.random.split(key)
        params.append(jax.random.normal(k1, (din, dout), jnp.float32) / jnp.sqrt(din))
        params.append(jnp.zeros((1, dout), jnp.float32) + 0.01)
    for din, dout in zip(dims_f[:-1], dims_f[1:]):
        key, k1 = jax.random.split(key)
        params.append(jax.random.normal(k1, (din, dout), jnp.float32) / jnp.sqrt(din))
        params.append(jnp.zeros((1, dout), jnp.float32) + 0.01)
    return tuple(params)


if __name__ == "__main__":
    key = jax.random.PRNGKey(0)

    # Small config: B=2, C=obj_fdim=4, H=W=4 -> n_objects=16, n_pairs=256
    B, C, H, W = 2, 4, 4, 4
    num_objects_list = [H, W]
    hidden_dims_g = [32, 32]
    output_dim_g = 32
    hidden_dims_f = [32]
    output_dim_f = 8
    use_tanh = False  # tanh=False -> ReLU

    key, kx, kp = jax.random.split(key, 3)
    x = jax.random.normal(kx, (B, C, H, W), jnp.float32)
    params = init_params(kp, C, num_objects_list, hidden_dims_g, output_dim_g,
                         hidden_dims_f, output_dim_f)

    out = relation_network_forward(x, params, num_objects_list, use_tanh=use_tanh)
    out = jax.block_until_ready(out)

    ref = relation_network_reference(x, params, num_objects_list, use_tanh=use_tanh)
    assert out.shape == (B, output_dim_f)
    assert jnp.allclose(out, ref, atol=1e-3, rtol=1e-3), (out, ref)

    print("KERNEL_OK")
</pallas_src>

<mosaic_0001>
module attributes {stable_mosaic.version = 11 : i64} {
  func.func @_g_sum_kernel(%arg0: i32, %arg1: i32, %arg2: memref<1x16x32xf32, #tpu.memory_space<vmem>>, %arg3: memref<1x16x32xf32, #tpu.memory_space<vmem>>, %arg4: memref<256x32xf32, #tpu.memory_space<vmem>>, %arg5: memref<32x32xf32, #tpu.memory_space<vmem>>, %arg6: memref<1x32xf32, #tpu.memory_space<vmem>>, %arg7: memref<32x32xf32, #tpu.memory_space<vmem>>, %arg8: memref<1x32xf32, #tpu.memory_space<vmem>>, %arg9: memref<1x1x32xf32, #tpu.memory_space<vmem>>, %arg10: memref<8x32xf32, #tpu.memory_space<vmem>>) attributes {dimension_semantics = [#tpu.dimension_semantics<parallel>, #tpu.dimension_semantics<arbitrary>], iteration_bounds = array<i64: 2, 1>, scalar_prefetch = 0 : i64, scratch_operands = 1 : i64, tpu.core_type = #tpu.core_type<tc>, window_params = [{transform_indices = @transform_0, window_bounds = array<i64: 1, 16, 32>}, {transform_indices = @transform_1, window_bounds = array<i64: 1, 16, 32>}, {transform_indices = @transform_2, window_bounds = array<i64: 256, 32>}, {pipeline_mode = #tpu.pipeline_mode<synchronous>, transform_indices = @transform_3, window_bounds = array<i64: 32, 32>}, {pipeline_mode = #tpu.pipeline_mode<synchronous>, transform_indices = @transform_4, window_bounds = array<i64: 1, 32>}, {pipeline_mode = #tpu.pipeline_mode<synchronous>, transform_indices = @transform_5, window_bounds = array<i64: 32, 32>}, {pipeline_mode = #tpu.pipeline_mode<synchronous>, transform_indices = @transform_6, window_bounds = array<i64: 1, 32>}, {transform_indices = @transform_7, window_bounds = array<i64: 1, 1, 32>}]} {
    %c0_i32 = arith.constant 0 : i32
    %0 = arith.cmpi eq, %arg1, %c0_i32 : i32
    %1 = arith.extui %0 : i1 to i32
    %c0_i32_0 = arith.constant 0 : i32
    %2 = arith.cmpi ne, %1, %c0_i32_0 : i32
    scf.if %2 {
      %cst_27 = arith.constant 0.000000e+00 : f32
      %40 = vector.broadcast %cst_27 : f32 to vector<8x32xf32>
      %c0_28 = arith.constant 0 : index
      %c0_29 = arith.constant 0 : index
      %41 = vector.load %arg10[%c0_28, %c0_29] : memref<8x32xf32, #tpu.memory_space<vmem>>, vector<8x32xf32>
      tpu.vector_store %arg10[%c0_28, %c0_29], %40 {strides = array<i32>} : memref<8x32xf32, #tpu.memory_space<vmem>>, vector<8x32xf32>,
    } else {
    }
    %c0 = arith.constant 0 : index
    %c0_1 = arith.constant 0 : index
    %c0_2 = arith.constant 0 : index
    %3 = vector.load %arg2[%c0, %c0_1, %c0_2] : memref<1x16x32xf32, #tpu.memory_space<vmem>>, vector<1x16x32xf32>
    %4 = vector.shape_cast %3 : vector<1x16x32xf32> to vector<16x32xf32>
    %c0_3 = arith.constant 0 : index
    %c0_4 = arith.constant 0 : index
    %c0_5 = arith.constant 0 : index
    %5 = vector.load %arg3[%c0_3, %c0_4, %c0_5] : memref<1x16x32xf32, #tpu.memory_space<vmem>>, vector<1x16x32xf32>
    %6 = vector.shape_cast %5 : vector<1x16x32xf32> to vector<16x32xf32>
    %c0_6 = arith.constant 0 : index
    %c0_7 = arith.constant 0 : index
    %7 = vector.load %arg4[%c0_6, %c0_7] : memref<256x32xf32, #tpu.memory_space<vmem>>, vector<256x32xf32>
    %8 = vector.shape_cast %7 : vector<256x32xf32> to vector<16x16x32xf32>
    %9 = vector.shape_cast %4 : vector<16x32xf32> to vector<1x16x32xf32>
    %10 = vector.broadcast %9 : vector<1x16x32xf32> to vector<16x16x32xf32>
    %11 = arith.addf %8, %10 : vector<16x16x32xf32>
    %12 = vector.shape_cast %6 : vector<16x32xf32> to vector<16x1x32xf32>
    %13 = vector.broadcast %12 : vector<16x1x32xf32> to vector<16x16x32xf32>
    %14 = arith.addf %11, %13 : vector<16x16x32xf32>
    %cst = arith.constant 0.000000e+00 : f32
    %15 = vector.broadcast %cst : f32 to vector<16x16x32xf32>
    %16 = arith.maximumf %14, %15 : vector<16x16x32xf32>
    %17 = vector.shape_cast %16 : vector<16x16x32xf32> to vector<256x32xf32>
    %c0_8 = arith.constant 0 : index
    %c0_9 = arith.constant 0 : index
    %18 = vector.load %arg5[%c0_8, %c0_9] : memref<32x32xf32, #tpu.memory_space<vmem>>, vector<32x32xf32>
    %cst_10 = arith.constant dense<0.000000e+00> : vector<256x32xf32>
    %19 = tpu.matmul %17, %18, %cst_10 {dimension_numbers = #tpu.dot_dimension_numbers<[1], [0], [0], [1], [0, 0, 1, 1], [], []>} : vector<256x32xf32>, vector<32x32xf32>, vector<256x32xf32> -> vector<256x32xf32>
    %c0_11 = arith.constant 0 : index
    %c0_12 = arith.constant 0 : index
    %20 = vector.load %arg6[%c0_11, %c0_12] : memref<1x32xf32, #tpu.memory_space<vmem>>, vector<1x32xf32>
    %21 = vector.broadcast %20 : vector<1x32xf32> to vector<256x32xf32>
    %22 = arith.addf %19, %21 : vector<256x32xf32>
    %cst_13 = arith.constant 0.000000e+00 : f32
    %23 = vector.broadcast %cst_13 : f32 to vector<256x32xf32>
    %24 = arith.maximumf %22, %23 : vector<256x32xf32>
    %c0_14 = arith.constant 0 : index
    %c0_15 = arith.constant 0 : index
    %25 = vector.load %arg7[%c0_14, %c0_15] : memref<32x32xf32, #tpu.memory_space<vmem>>, vector<32x32xf32>
    %cst_16 = arith.constant dense<0.000000e+00> : vector<256x32xf32>
    %26 = tpu.matmul %24, %25, %cst_16 {dimension_numbers = #tpu.dot_dimension_numbers<[1], [0], [0], [1], [0, 0, 1, 1], [], []>} : vector<256x32xf32>, vector<32x32xf32>, vector<256x32xf32> -> vector<256x32xf32>
    %c0_17 = arith.constant 0 : index
    %c0_18 = arith.constant 0 : index
    %27 = vector.load %arg8[%c0_17, %c0_18] : memref<1x32xf32, #tpu.memory_space<vmem>>, vector<1x32xf32>
    %28 = vector.broadcast %27 : vector<1x32xf32> to vector<256x32xf32>
    %29 = arith.addf %26, %28 : vector<256x32xf32>
    %cst_19 = arith.constant 0.000000e+00 : f32
    %30 = vector.broadcast %cst_19 : f32 to vector<256x32xf32>
    %31 = arith.maximumf %29, %30 : vector<256x32xf32>
    %c0_20 = arith.constant 0 : index
    %c0_21 = arith.constant 0 : index
    %32 = vector.load %arg10[%c0_20, %c0_21] : memref<8x32xf32, #tpu.memory_space<vmem>>, vector<8x32xf32>
    %33 = vector.shape_cast %31 : vector<256x32xf32> to vector<32x8x32xf32>
    %cst_22 = arith.constant dense<0.000000e+00> : vector<8x32xf32>
    %34 = vector.multi_reduction <add>, %33, %cst_22 [0] : vector<32x8x32xf32> to vector<8x32xf32>
    %35 = arith.addf %32, %34 : vector<8x32xf32>
    %c0_23 = arith.constant 0 : index
    %c0_24 = arith.constant 0 : index
    %36 = vector.load %arg10[%c0_23, %c0_24] : memref<8x32xf32, #tpu.memory_space<vmem>>, vector<8x32xf32>
    tpu.vector_store %arg10[%c0_23, %c0_24], %35 {strides = array<i32>} : memref<8x32xf32, #tpu.memory_space<vmem>>, vector<8x32xf32>,
    %c0_i32_25 = arith.constant 0 : i32
    %37 = arith.cmpi eq, %arg1, %c0_i32_25 : i32
    %38 = arith.extui %37 : i1 to i32
    %c0_i32_26 = arith.constant 0 : i32
    %39 = arith.cmpi ne, %38, %c0_i32_26 : i32
    scf.if %39 {
      %c0_27 = arith.constant 0 : index
      %c0_28 = arith.constant 0 : index
      %40 = vector.load %arg10[%c0_27, %c0_28] : memref<8x32xf32, #tpu.memory_space<vmem>>, vector<8x32xf32>
      %cst_29 = arith.constant dense<0.000000e+00> : vector<32xf32>
      %41 = vector.multi_reduction <add>, %40, %cst_29 [0] : vector<8x32xf32> to vector<32xf32>
      %42 = vector.shape_cast %41 : vector<32xf32> to vector<1x32xf32>
      %43 = vector.shape_cast %42 : vector<1x32xf32> to vector<1x1x32xf32>
      %c0_30 = arith.constant 0 : index
      %c0_31 = arith.constant 0 : index
      %c0_32 = arith.constant 0 : index
      %44 = vector.load %arg9[%c0_30, %c0_31, %c0_32] : memref<1x1x32xf32, #tpu.memory_space<vmem>>, vector<1x1x32xf32>
      tpu.vector_store %arg9[%c0_30, %c0_31, %c0_32], %43 {strides = array<i32>} : memref<1x1x32xf32, #tpu.memory_space<vmem>>, vector<1x1x32xf32>,
    } else {
    }
    return
  }
  func.func @transform_0(%arg0: i32, %arg1: i32) -> (i32, i32, i32) {
    %c0_i32 = arith.constant 0 : i32
    %c0_i32_0 = arith.constant 0 : i32
    %c0_i32_1 = arith.constant 0 : i32
    return %arg0, %c0_i32, %c0_i32_0 : i32, i32, i32
  }
  func.func @transform_1(%arg0: i32, %arg1: i32) -> (i32, i32, i32) {
    %c0_i32 = arith.constant 0 : i32
    %c0_i32_0 = arith.constant 0 : i32
    return %arg0, %arg1, %c0_i32 : i32, i32, i32
  }
  func.func @transform_2(%arg0: i32, %arg1: i32) -> (i32, i32) {
    %c0_i32 = arith.constant 0 : i32
    %c0_i32_0 = arith.constant 0 : i32
    return %arg1, %c0_i32 : i32, i32
  }
  func.func @transform_3(%arg0: i32, %arg1: i32) -> (i32, i32) {
    %c0_i32 = arith.constant 0 : i32
    %c0_i32_0 = arith.constant 0 : i32
    %c0_i32_1 = arith.constant 0 : i32
    return %c0_i32, %c0_i32_0 : i32, i32
  }
  func.func @transform_4(%arg0: i32, %arg1: i32) -> (i32, i32) {
    %c0_i32 = arith.constant 0 : i32
    %c0_i32_0 = arith.constant 0 : i32
    %c0_i32_1 = arith.constant 0 : i32
    return %c0_i32, %c0_i32_0 : i32, i32
  }
  func.func @transform_5(%arg0: i32, %arg1: i32) -> (i32, i32) {
    %c0_i32 = arith.constant 0 : i32
    %c0_i32_0 = arith.constant 0 : i32
    %c0_i32_1 = arith.constant 0 : i32
    return %c0_i32, %c0_i32_0 : i32, i32
  }
  func.func @transform_6(%arg0: i32, %arg1: i32) -> (i32, i32) {
    %c0_i32 = arith.constant 0 : i32
    %c0_i32_0 = arith.constant 0 : i32
    %c0_i32_1 = arith.constant 0 : i32
    return %c0_i32, %c0_i32_0 : i32, i32
  }
  func.func @transform_7(%arg0: i32, %arg1: i32) -> (i32, i32, i32) {
    %c0_i32 = arith.constant 0 : i32
    %c0_i32_0 = arith.constant 0 : i32
    %c0_i32_1 = arith.constant 0 : i32
    return %arg0, %c0_i32, %c0_i32_0 : i32, i32, i32
  }
}

</mosaic_0001>

<llo_original>
// kernel: tpu_custom_call.1
$region0: #{tpu_custom_call.1}
  #allocation0 [shape = 'u32[]', space=smem, size = 0x4, offset = 0x4, fixed_abs, tag = 'smem constant byte address 0x4 - core index']
  #allocation1 [shape = 'u32[144,128]{1,0:T(1,128)}', space=vmem, size = 0x12000, scoped, tag = 'internal scratch']
  #allocation2 [shape = 'f32[8,32]{1,0:T(8,128)}', space=vmem, size = 0x1000, scoped, tag = 'scratch operand']
  %s0 = inlined_call_operand.vmem [shape: f32[2,16,32], index: 0, kind: input, shape index: {}]
  %s1 = inlined_call_operand.vmem [shape: f32[2,16,32], index: 1, kind: input, shape index: {}]
  %s2 = inlined_call_operand.vmem [shape: f32[256,32], index: 2, kind: input, shape index: {}]
  %s3 = inlined_call_operand.vmem [shape: f32[32,32], index: 3, kind: input, shape index: {}]
  %s4 = inlined_call_operand.vmem [shape: f32[1,32], index: 4, kind: input, shape index: {}]
  %s5 = inlined_call_operand.vmem [shape: f32[32,32], index: 5, kind: input, shape index: {}]
  %s6 = inlined_call_operand.vmem [shape: f32[1,32], index: 6, kind: input, shape index: {}]
  %s7 = inlined_call_operand.hbm [shape: f32[2,1,32], index: 7, kind: output, shape index: {}]
  %s8 = sld [smem:[#allocation0]]
  $region69: #{tpu_custom_call.1} parent=0
    _
  %s10 = ssub.s32 1, %s8
  %s11 = scalar_select 0, %s10, %s8
  $region1: #{tpu_custom_call.1} parent=0
    #allocation3 [shape = 'u8[1024]{0}', space=vmem, size = 0x400, scoped, tag = 'output window, operand 0']
    #allocation4 [shape = 's32[2]{0}', space=sflag, size = 0x8, scoped, tag = 'scoped memory for tpu_custom_call.1']
    %12 = vsyncpa [#allocation4], 0
    %s13 = scalar_lea.sflag [#allocation4], 1
    %14 = vsyncpa %s13, 0
    loop: start=0, step=1, limit=4
    $region2: #{tpu_custom_call.1} parent=1 // loop_pre_header
      _
    $region3: #{tpu_custom_call.1} parent=1 // loop_header
      %s16 = sphi 0, %s20
      %p17 = scmp.ge.s32.totalorder %s16, 4
      %s23 = sphi 0, %s35
      %s24 = sphi 0, %s31
      %s25 = sphi 0, %s23
      %s26 = sphi 0, %s24
      %s27 = sphi 0, %s25
      %s28 = sphi 0, %s26
      %s38 = sphi 0, %s40
      %s41 = sphi 0, %s38
      %s42 = sphi 0, %s41
      %s58 = sphi 0, %s42
      %s66 = sphi 0, %s68
      %s69 = sphi 0, %s66
      %s70 = sphi 0, %s69
      %s86 = sphi 0, %s70
      %s92 = sphi 0, %s94
      %s95 = sphi 0, %s92
      %s96 = sphi 0, %s95
      %s112 = sphi 0, %s96
      %s116 = sphi 0, %s116
      %s118 = sphi 0, %s116
      %s119 = sphi 0, %s118
      %s133 = sphi 0, %s119
      %s137 = sphi 0, %s137
      %s139 = sphi 0, %s137
      %s140 = sphi 0, %s139
      %s154 = sphi 0, %s140
      %s158 = sphi 0, %s158
      %s160 = sphi 0, %s158
      %s161 = sphi 0, %s160
      %s175 = sphi 0, %s161
      %s179 = sphi 0, %s179
      %s181 = sphi 0, %s179
      %s182 = sphi 0, %s181
      %s196 = sphi 0, %s182
      %s202 = sphi 0, %s204
      %s205 = sphi 0, %s202
      %s206 = sphi 0, %s205
      %s222 = sphi 0, %s206
    $region4: #{tpu_custom_call.1} parent=1 // loop_header_branch
      %19 = sbr.rel (%p17) target = $region8
    $region5: #{tpu_custom_call.1} parent=1 // loop_body
      %s21 = ssub.s32 %s16, 1
      %s22 = ssub.s32 %s16, 2
      %s29 = sadd.s32 1, %s24
      %p30 = scmp.ge.s32.totalorder %s29, 1
      %s31 = scalar_select %p30, 0, %s29
      %s32 = sadd.s32 1, %s23
      %s33 = scalar_select %p30, %s32, %s23
      %p34 = scmp.ge.s32.totalorder %s33, 2
      %s35 = scalar_select %p34, 0, %s33
      %s36 = ssub.s32 %s23, %s35
      %p37 = scmp.eq.s32.totalorder %s36, 0
      %s39 = sadd.s32 %s38, 1
      %s40 = scalar_select %p37, %s38, %s39
      %p43 = pneg %p37
      %p44 = scmp.eq.s32.totalorder %s16, 1
      %p45 = por %p43, %p44
      %p46 = scmp.ne.s32.totalorder %s38, %s41
      %p47 = scmp.eq.s32.totalorder %s16, 0
      %p48 = por %p46, %p47
      %p49 = scmp.ne.s32.totalorder %s38, %s41
      %p50 = scmp.eq.s32.totalorder %s21, 1
      %p51 = por %p49, %p50
      %p52 = scmp.ne.s32.totalorder %s41, %s42
      %p53 = scmp.eq.s32.totalorder %s21, 0
      %p54 = por %p52, %p53
      %p55 = scmp.ne.s32.totalorder %s41, %s42
      %p56 = scmp.eq.s32.totalorder %s22, 1
      %p57 = por %p55, %p56
      %p59 = scmp.ne.s32.totalorder %s42, %s58
      %p60 = scmp.eq.s32.totalorder %s22, 0
      %p61 = por %p59, %p60
      %s62 = ssub.s32 %s23, %s35
      %s63 = ssub.s32 %s24, %s31
      %s64 = sor.u32 %s62, %s63
      %p65 = scmp.eq.s32.totalorder %s64, 0
      %s67 = sadd.s32 %s66, 1
      %s68 = scalar_select %p65, %s66, %s67
      %p71 = pneg %p65
      %p72 = scmp.eq.s32.totalorder %s16, 1
      %p73 = por %p71, %p72
      %p74 = scmp.ne.s32.totalorder %s66, %s69
      %p75 = scmp.eq.s32.totalorder %s16, 0
      %p76 = por %p74, %p75
      %p77 = scmp.ne.s32.totalorder %s66, %s69
      %p78 = scmp.eq.s32.totalorder %s21, 1
      %p79 = por %p77, %p78
      %p80 = scmp.ne.s32.totalorder %s69, %s70
      %p81 = scmp.eq.s32.totalorder %s21, 0
      %p82 = por %p80, %p81
      %p83 = scmp.ne.s32.totalorder %s69, %s70
      %p84 = scmp.eq.s32.totalorder %s22, 1
      %p85 = por %p83, %p84
      %p87 = scmp.ne.s32.totalorder %s70, %s86
      %p88 = scmp.eq.s32.totalorder %s22, 0
      %p89 = por %p87, %p88
      %s90 = ssub.s32 %s24, %s31
      %p91 = scmp.eq.s32.totalorder %s90, 0
      %s93 = sadd.s32 %s92, 1
      %s94 = scalar_select %p91, %s92, %s93
      %p97 = pneg %p91
      %p98 = scmp.eq.s32.totalorder %s16, 1
      %p99 = por %p97, %p98
      %p100 = scmp.ne.s32.totalorder %s92, %s95
      %p101 = scmp.eq.s32.totalorder %s16, 0
      %p102 = por %p100, %p101
      %p103 = scmp.ne.s32.totalorder %s92, %s95
      %p104 = scmp.eq.s32.totalorder %s21, 1
      %p105 = por %p103, %p104
      %p106 = scmp.ne.s32.totalorder %s95, %s96
      %p107 = scmp.eq.s32.totalorder %s21, 0
      %p108 = por %p106, %p107
      %p109 = scmp.ne.s32.totalorder %s95, %s96
      %p110 = scmp.eq.s32.totalorder %s22, 1
      %p111 = por %p109, %p110
      %p113 = scmp.ne.s32.totalorder %s96, %s112
      %p114 = scmp.eq.s32.totalorder %s22, 0
      %p115 = por %p113, %p114
      %s117 = sadd.s32 %s116, 1
      %p120 = scmp.eq.s32.totalorder %s16, 1
      %p121 = scmp.ne.s32.totalorder %s116, %s118
      %p122 = scmp.eq.s32.totalorder %s16, 0
      %p123 = por %p121, %p122
      %p124 = scmp.ne.s32.totalorder %s116, %s118
      %p125 = scmp.eq.s32.totalorder %s21, 1
      %p126 = por %p124, %p125
      %p127 = scmp.ne.s32.totalorder %s118, %s119
      %p128 = scmp.eq.s32.totalorder %s21, 0
      %p129 = por %p127, %p128
      %p130 = scmp.ne.s32.totalorder %s118, %s119
      %p131 = scmp.eq.s32.totalorder %s22, 1
      %p132 = por %p130, %p131
      %p134 = scmp.ne.s32.totalorder %s119, %s133
      %p135 = scmp.eq.s32.totalorder %s22, 0
      %p136 = por %p134, %p135
      %s138 = sadd.s32 %s137, 1
      %p141 = scmp.eq.s32.totalorder %s16, 1
      %p142 = scmp.ne.s32.totalorder %s137, %s139
      %p143 = scmp.eq.s32.totalorder %s16, 0
      %p144 = por %p142, %p143
      %p145 = scmp.ne.s32.totalorder %s137, %s139
      %p146 = scmp.eq.s32.totalorder %s21, 1
      %p147 = por %p145, %p146
      %p148 = scmp.ne.s32.totalorder %s139, %s140
      %p149 = scmp.eq.s32.totalorder %s21, 0
      %p150 = por %p148, %p149
      %p151 = scmp.ne.s32.totalorder %s139, %s140
      %p152 = scmp.eq.s32.totalorder %s22, 1
      %p153 = por %p151, %p152
      %p155 = scmp.ne.s32.totalorder %s140, %s154
      %p156 = scmp.eq.s32.totalorder %s22, 0
      %p157 = por %p155, %p156
      %s159 = sadd.s32 %s158, 1
      %p162 = scmp.eq.s32.totalorder %s16, 1
      %p163 = scmp.ne.s32.totalorder %s158, %s160
      %p164 = scmp.eq.s32.totalorder %s16, 0
      %p165 = por %p163, %p164
      %p166 = scmp.ne.s32.totalorder %s158, %s160
      %p167 = scmp.eq.s32.totalorder %s21, 1
      %p168 = por %p166, %p167
      %p169 = scmp.ne.s32.totalorder %s160, %s161
      %p170 = scmp.eq.s32.totalorder %s21, 0
      %p171 = por %p169, %p170
      %p172 = scmp.ne.s32.totalorder %s160, %s161
      %p173 = scmp.eq.s32.totalorder %s22, 1
      %p174 = por %p172, %p173
      %p176 = scmp.ne.s32.totalorder %s161, %s175
      %p177 = scmp.eq.s32.totalorder %s22, 0
      %p178 = por %p176, %p177
      %s180 = sadd.s32 %s179, 1
      %p183 = scmp.eq.s32.totalorder %s16, 1
      %p184 = scmp.ne.s32.totalorder %s179, %s181
      %p185 = scmp.eq.s32.totalorder %s16, 0
      %p186 = por %p184, %p185
      %p187 = scmp.ne.s32.totalorder %s179, %s181
      %p188 = scmp.eq.s32.totalorder %s21, 1
      %p189 = por %p187, %p188
      %p190 = scmp.ne.s32.totalorder %s181, %s182
      %p191 = scmp.eq.s32.totalorder %s21, 0
      %p192 = por %p190, %p191
      %p193 = scmp.ne.s32.totalorder %s181, %s182
      %p194 = scmp.eq.s32.totalorder %s22, 1
      %p195 = por %p193, %p194
      %p197 = scmp.ne.s32.totalorder %s182, %s196
      %p198 = scmp.eq.s32.totalorder %s22, 0
      %p199 = por %p197, %p198
      %s200 = ssub.s32 %s23, %s35
      %p201 = scmp.eq.s32.totalorder %s200, 0
      %s203 = sadd.s32 %s202, 1
      %s204 = scalar_select %p201, %s202, %s203
      %p207 = pneg %p201
      %p208 = scmp.eq.s32.totalorder %s16, 1
      %p209 = por %p207, %p208
      %p210 = scmp.ne.s32.totalorder %s202, %s205
      %p211 = scmp.eq.s32.totalorder %s16, 0
      %p212 = por %p210, %p211
      %p213 = scmp.ne.s32.totalorder %s202, %s205
      %p214 = scmp.eq.s32.totalorder %s21, 1
      %p215 = por %p213, %p214
      %p216 = scmp.ne.s32.totalorder %s205, %s206
      %p217 = scmp.eq.s32.totalorder %s21, 0
      %p218 = por %p216, %p217
      %p219 = scmp.ne.s32.totalorder %s205, %s206
      %p220 = scmp.eq.s32.totalorder %s22, 1
      %p221 = por %p219, %p220
      %p223 = scmp.ne.s32.totalorder %s206, %s222
      %p224 = scmp.eq.s32.totalorder %s22, 0
      %p225 = por %p223, %p224
      %p226 = scmp.le.s32.totalorder 1, %s16
      %p227 = scmp.lt.s32.totalorder %s16, 3
      %p228 = pnand %p226, %p227
      %p229 = pneg %p228
      // Predicated region
      $region9: #{tpu_custom_call.1} parent=5 // pred_check
        _
      $region10: #{tpu_custom_call.1} parent=5 // pred_check_branch
        %231 = sbr.rel (%p228) target = $region12
      $region11: #{tpu_custom_call.1} parent=5 // pred_region
        %s232 = ssub.s32 %s16, 1
        // Predicated region
        $region13: #{tpu_custom_call.1} parent=11 // pred_check
          %p233 = pneg %p108
        $region14: #{tpu_custom_call.1} parent=11 // pred_check_branch
          %235 = sbr.rel (%p233) target = $region16
        $region15: #{tpu_custom_call.1} parent=11 // pred_region
          %s236 = smul.u32 32, %s26
          %p237 = scmp.lt.s32.totalorder %s236, 31
          %s238 = scalar_select %p237, %s236, 31
          %s239 = smul.addr %s238, 8
          %s240 = scalar_lea.vmem %s2, %s239
          %s241 = smul.u32 32, %s26
        $region16: #{tpu_custom_call.1} parent=11 // pred_fallthru
          _
        // Predicated region
        $region17: #{tpu_custom_call.1} parent=11 // pred_check
          %p242 = pneg %p129
        $region18: #{tpu_custom_call.1} parent=11 // pred_check_branch
          %244 = sbr.rel (%p242) target = $region20
        $region19: #{tpu_custom_call.1} parent=11 // pred_region
          _
        $region20: #{tpu_custom_call.1} parent=11 // pred_fallthru
          _
        // Predicated region
        $region21: #{tpu_custom_call.1} parent=11 // pred_check
          %p245 = pneg %p150
        $region22: #{tpu_custom_call.1} parent=11 // pred_check_branch
          %247 = sbr.rel (%p245) target = $region24
        $region23: #{tpu_custom_call.1} parent=11 // pred_region
          _
        $region24: #{tpu_custom_call.1} parent=11 // pred_fallthru
          _
        // Predicated region
        $region25: #{tpu_custom_call.1} parent=11 // pred_check
          %p248 = pneg %p171
        $region26: #{tpu_custom_call.1} parent=11 // pred_check_branch
          %250 = sbr.rel (%p248) target = $region28
        $region27: #{tpu_custom_call.1} parent=11 // pred_region
          _
        $region28: #{tpu_custom_call.1} parent=11 // pred_fallthru
          _
        // Predicated region
        $region29: #{tpu_custom_call.1} parent=11 // pred_check
          %p251 = pneg %p192
        $region30: #{tpu_custom_call.1} parent=11 // pred_check_branch
          %253 = sbr.rel (%p251) target = $region32
        $region31: #{tpu_custom_call.1} parent=11 // pred_region
          _
        $region32: #{tpu_custom_call.1} parent=11 // pred_fallthru
          _
      $region12: #{tpu_custom_call.1} parent=5 // pred_fallthru
        _
      %p254 = scmp.lt.s32.totalorder %s16, 2
      // Predicated region
      $region33: #{tpu_custom_call.1} parent=5 // pred_check
        %p255 = pneg %p254
      $region34: #{tpu_custom_call.1} parent=5 // pred_check_branch
        %257 = sbr.rel (%p255) target = $region36
      $region35: #{tpu_custom_call.1} parent=5 // pred_region
        // Predicated region
        $region37: #{tpu_custom_call.1} parent=35 // pred_check
          %p258 = pneg %p48
        $region38: #{tpu_custom_call.1} parent=35 // pred_check_branch
          %260 = sbr.rel (%p258) target = $region40
        $region39: #{tpu_custom_call.1} parent=35 // pred_region
          %p261 = scmp.lt.s32.totalorder %s23, 1
          %s262 = scalar_select %p261, %s23, 1
          %s263 = smul.addr %s262, 2
          %s264 = smul.addr %s263, 8
          %s265 = scalar_lea.vmem %s0, %s264
        $region40: #{tpu_custom_call.1} parent=35 // pred_fallthru
          _
        // Predicated region
        $region41: #{tpu_custom_call.1} parent=35 // pred_check
          %p266 = pneg %p76
        $region42: #{tpu_custom_call.1} parent=35 // pred_check_branch
          %268 = sbr.rel (%p266) target = $region44
        $region43: #{tpu_custom_call.1} parent=35 // pred_region
          %s269 = smul.u32 2, %s24
          %p270 = scmp.lt.s32.totalorder %s23, 1
          %s271 = scalar_select %p270, %s23, 1
          %p272 = scmp.lt.s32.totalorder %s269, 1
          %s273 = scalar_select %p272, %s269, 1
          %s274 = smul.addr %s271, 2
          %s275 = sadd.s32 %s273, %s274
          %s276 = smul.addr %s275, 8
          %s277 = scalar_lea.vmem %s1, %s276
          %s278 = smul.u32 2, %s24
        $region44: #{tpu_custom_call.1} parent=35 // pred_fallthru
          _
      $region36: #{tpu_custom_call.1} parent=5 // pred_fallthru
        _
      %p279 = scmp.le.s32.totalorder 1, %s16
      %p280 = scmp.lt.s32.totalorder %s16, 3
      %p281 = pnand %p279, %p280
      %p282 = pneg %p281
      // Predicated region
      $region45: #{tpu_custom_call.1} parent=5 // pred_check
        _
      $region46: #{tpu_custom_call.1} parent=5 // pred_check_branch
        %284 = sbr.rel (%p281) target = $region48
      $region47: #{tpu_custom_call.1} parent=5 // pred_region
        %s285 = ssub.s32 %s16, 1
        %p286 = scmp.lt.s32.totalorder %s25, 1
        %s287 = scalar_select %p286, %s25, 1
        %s288 = smul.addr %s287, 2
        %s289 = smul.addr %s288, 8
        %s290 = scalar_lea.vmem %s0, %s289
        %p291 = pneg %p54
        %p292 = pneg %p51
        %s293 = smul.u32 2, %s26
        %p294 = scmp.lt.s32.totalorder %s25, 1
        %s295 = scalar_select %p294, %s25, 1
        %p296 = scmp.lt.s32.totalorder %s293, 1
        %s297 = scalar_select %p296, %s293, 1
        %s298 = smul.addr %s295, 2
        %s299 = sadd.s32 %s297, %s298
        %s300 = smul.addr %s299, 8
        %s301 = scalar_lea.vmem %s1, %s300
        %p302 = pneg %p82
        %p303 = pneg %p79
        %s304 = smul.u32 32, %s26
        %p305 = scmp.lt.s32.totalorder %s304, 31
        %s306 = scalar_select %p305, %s304, 31
        %s307 = smul.addr %s306, 8
        %s308 = scalar_lea.vmem %s2, %s307
        %p309 = pneg %p108
        %p310 = pneg %p105
        %p311 = pneg %p129
        %p312 = pneg %p126
        %p313 = pneg %p150
        %p314 = pneg %p147
        %p315 = pneg %p171
        %p316 = pneg %p168
        %p317 = pneg %p192
        %p318 = pneg %p189
        %p319 = pneg %p218
        %p320 = pneg %p215
        %s321 = sand.u32 %s205, 1
        %s322 = scalar_lea.sflag [#allocation4], %s321
        %s323 = sand.u32 %s205, 1
        %s324 = scalar_lea.vmem [#allocation3], %s323
        %p325 = scmp.lt.s32.totalorder %s25, 1
        %s326 = scalar_select %p325, %s25, 1
        %s327 = smul.addr %s326, 2
        %s328 = smul.addr %s327, 8
        %s329 = scalar_lea.vmem %s0, %s328
        %s330 = smul.u32 2, %s26
        %p331 = scmp.lt.s32.totalorder %s25, 1
        %s332 = scalar_select %p331, %s25, 1
        %p333 = scmp.lt.s32.totalorder %s330, 1
        %s334 = scalar_select %p333, %s330, 1
        %s335 = smul.addr %s332, 2
        %s336 = sadd.s32 %s334, %s335
        %s337 = smul.addr %s336, 8
        %s338 = scalar_lea.vmem %s1, %s337
        %s339 = smul.u32 2, %s26
        %s340 = smul.u32 32, %s26
        %p341 = scmp.lt.s32.totalorder %s340, 31
        %s342 = scalar_select %p341, %s340, 31
        %s343 = smul.addr %s342, 8
        %s344 = scalar_lea.vmem %s2, %s343
        %s345 = smul.u32 32, %s26
        %p346 = scmp.eq.s32.totalorder %s26, 0
        // Predicated region
        $region49: #{tpu_custom_call.1} parent=47 // pred_check
          %p347 = pneg %p346
        $region50: #{tpu_custom_call.1} parent=47 // pred_check_branch
          %349 = sbr.rel (%p347) target = $region52
        $region51: #{tpu_custom_call.1} parent=47 // pred_region
          %vm350 = vcmask 261120
          %351 = vst.msk [vmem:[#allocation2] sm:$0xff] %vm350, 0.0
        $region52: #{tpu_custom_call.1} parent=47 // pred_fallthru
          _
        %v352 = vld [vmem:[%s329] sm:$0xff]
        %v353 = vld [vmem:[%s329 + $0x8] sm:$0xff]
        %v354 = vld [vmem:[%s338] sm:$0xff]
        %v355 = vld [vmem:[%s338 + $0x8] sm:$0xff]
        %v356 = vld [vmem:[%s344] sm:$0xff]
        %v357 = vld [vmem:[%s344 + $0x8] sm:$0xff]
        %v358 = vld [vmem:[%s344 + $0x10] sm:$0xff]
        %v359 = vld [vmem:[%s344 + $0x18] sm:$0xff]
        %v360 = vld [vmem:[%s344 + $0x20] sm:$0xff]
        %v361 = vld [vmem:[%s344 + $0x28] sm:$0xff]
        %v362 = vld [vmem:[%s344 + $0x30] sm:$0xff]
        %v363 = vld [vmem:[%s344 + $0x38] sm:$0xff]
        %v364 = vld [vmem:[%s344 + $0x40] sm:$0xff]
        %v365 = vld [vmem:[%s344 + $0x48] sm:$0xff]
        %v366 = vld [vmem:[%s344 + $0x50] sm:$0xff]
        %v367 = vld [vmem:[%s344 + $0x58] sm:$0xff]
        %v368 = vld [vmem:[%s344 + $0x60] sm:$0xff]
        %v369 = vld [vmem:[%s344 + $0x68] sm:$0xff]
        %v370 = vld [vmem:[%s344 + $0x70] sm:$0xff]
        %v371 = vld [vmem:[%s344 + $0x78] sm:$0xff]
        %v372 = vld [vmem:[%s344 + $0x80] sm:$0xff]
        %v373 = vld [vmem:[%s344 + $0x88] sm:$0xff]
        %v374 = vld [vmem:[%s344 + $0x90] sm:$0xff]
        %v375 = vld [vmem:[%s344 + $0x98] sm:$0xff]
        %v376 = vld [vmem:[%s344 + $0xa0] sm:$0xff]
        %v377 = vld [vmem:[%s344 + $0xa8] sm:$0xff]
        %v378 = vld [vmem:[%s344 + $0xb0] sm:$0xff]
        %v379 = vld [vmem:[%s344 + $0xb8] sm:$0xff]
        %v380 = vld [vmem:[%s344 + $0xc0] sm:$0xff]
        %v381 = vld [vmem:[%s344 + $0xc8] sm:$0xff]
        %v382 = vld [vmem:[%s344 + $0xd0] sm:$0xff]
        %v383 = vld [vmem:[%s344 + $0xd8] sm:$0xff]
        %v384 = vld [vmem:[%s344 + $0xe0] sm:$0xff]
        %v385 = vld [vmem:[%s344 + $0xe8] sm:$0xff]
        %v386 = vld [vmem:[%s344 + $0xf0] sm:$0xff]
        %v387 = vld [vmem:[%s344 + $0xf8] sm:$0xff]
        %v388 = vadd.f32 %v356, %v352
        %v389 = vadd.f32 %v357, %v353
        %v390 = vadd.f32 %v358, %v352
        %v391 = vadd.f32 %v359, %v353
        %v392 = vadd.f32 %v360, %v352
        %v393 = vadd.f32 %v361, %v353
        %v394 = vadd.f32 %v362, %v352
        %v395 = vadd.f32 %v363, %v353
        %v396 = vadd.f32 %v364, %v352
        %v397 = vadd.f32 %v365, %v353
        %v398 = vadd.f32 %v366, %v352
        %v399 = vadd.f32 %v367, %v353
        %v400 = vadd.f32 %v368, %v352
        %v401 = vadd.f32 %v369, %v353
        %v402 = vadd.f32 %v370, %v352
        %v403 = vadd.f32 %v371, %v353
        %v404 = vadd.f32 %v372, %v352
        %v405 = vadd.f32 %v373, %v353
        %v406 = vadd.f32 %v374, %v352
        %v407 = vadd.f32 %v375, %v353
        %v408 = vadd.f32 %v376, %v352
        %v409 = vadd.f32 %v377, %v353
        %v410 = vadd.f32 %v378, %v352
        %v411 = vadd.f32 %v379, %v353
        %v412 = vadd.f32 %v380, %v352
        %v413 = vadd.f32 %v381, %v353
        %v414 = vadd.f32 %v382, %v352
        %v415 = vadd.f32 %v383, %v353
        %v416 = vadd.f32 %v384, %v352
        %v417 = vadd.f32 %v385, %v353
        %v418 = vadd.f32 %v386, %v352
        %v419 = vadd.f32 %v387, %v353
        %v422 = vcombine.high %v354, %v354
        %v424 = vunpack.c.l.s4 1966171168
        %v425 = vunpack.c.0.s8 %v424
        %v426 = vlaneseq
        %v427 = vshrl.u32 %v426, 7
        %v428 = vsub.s32 %v425, %v427
        %v429 = vrot.slane %v354, %v428
        %v431 = vunpack.c.l.s4 1966171168
        %v432 = vunpack.c.0.s8 %v431
        %v433 = vlaneseq
        %v434 = vshrl.u32 %v433, 7
        %v435 = vsub.s32 %v432, %v434
        %v436 = vrot.slane %v422, %v435
        %v437 = vcombine.high %v429, %v429
        %v438 = vcombine.high %v436, %v436
        %v440 = vunpack.c.l.s4 1966171168
        %v441 = vunpack.c.0.s8 %v440
        %v442 = vlaneseq
        %v443 = vshrl.u32 %v442, 7
        %v444 = vsub.s32 %v441, %v443
        %v445 = vrot.slane %v429, %v444
        %v447 = vunpack.c.l.s4 1966171168
        %v448 = vunpack.c.0.s8 %v447
        %v449 = vlaneseq
        %v450 = vshrl.u32 %v449, 7
        %v451 = vsub.s32 %v448, %v450
        %v452 = vrot.slane %v436, %v451
        %v454 = vunpack.c.l.s4 1966171168
        %v455 = vunpack.c.0.s8 %v454
        %v456 = vlaneseq
        %v457 = vshrl.u32 %v456, 7
        %v458 = vsub.s32 %v455, %v457
        %v459 = vrot.slane %v437, %v458
        %v461 = vunpack.c.l.s4 1966171168
        %v462 = vunpack.c.0.s8 %v461
        %v463 = vlaneseq
        %v464 = vshrl.u32 %v463, 7
        %v465 = vsub.s32 %v462, %v464
        %v466 = vrot.slane %v438, %v465
        %v467 = vcombine.high %v445, %v445
        %v468 = vcombine.high %v452, %v452
        %v469 = vcombine.high %v459, %v459
        %v470 = vcombine.high %v466, %v466
        %v471 = vcombine.high %v355, %v355
        %v473 = vunpack.c.l.s4 1966171168
        %v474 = vunpack.c.0.s8 %v473
        %v475 = vlaneseq
        %v476 = vshrl.u32 %v475, 7
        %v477 = vsub.s32 %v474, %v476
        %v478 = vrot.slane %v355, %v477
        %v480 = vunpack.c.l.s4 1966171168
        %v481 = vunpack.c.0.s8 %v480
        %v482 = vlaneseq
        %v483 = vshrl.u32 %v482, 7
        %v484 = vsub.s32 %v481, %v483
        %v485 = vrot.slane %v471, %v484
        %v486 = vcombine.high %v478, %v478
        %v487 = vcombine.high %v485, %v485
        %v489 = vunpack.c.l.s4 1966171168
        %v490 = vunpack.c.0.s8 %v489
        %v491 = vlaneseq
        %v492 = vshrl.u32 %v491, 7
        %v493 = vsub.s32 %v490, %v492
        %v494 = vrot.slane %v478, %v493
        %v496 = vunpack.c.l.s4 1966171168
        %v497 = vunpack.c.0.s8 %v496
        %v498 = vlaneseq
        %v499 = vshrl.u32 %v498, 7
        %v500 = vsub.s32 %v497, %v499
        %v501 = vrot.slane %v485, %v500
        %v503 = vunpack.c.l.s4 1966171168
        %v504 = vunpack.c.0.s8 %v503
        %v505 = vlaneseq
        %v506 = vshrl.u32 %v505, 7
        %v507 = vsub.s32 %v504, %v506
        %v508 = vrot.slane %v486, %v507
        %v510 = vunpack.c.l.s4 1966171168
        %v511 = vunpack.c.0.s8 %v510
        %v512 = vlaneseq
        %v513 = vshrl.u32 %v512, 7
        %v514 = vsub.s32 %v511, %v513
        %v515 = vrot.slane %v487, %v514
        %v516 = vcombine.high %v494, %v494
        %v517 = vcombine.high %v501, %v501
        %v518 = vcombine.high %v508, %v508
        %v519 = vcombine.high %v515, %v515
        %v520 = vlaneseq
        %v521 = vshrl.u32 %v520, 7
        %v522 = vsub.s32 0, %v521
        %v523 = vrot.slane %v445, %v522
        %v524 = vlaneseq
        %v525 = vshrl.u32 %v524, 7
        %v526 = vsub.s32 0, %v525
        %v527 = vrot.slane %v459, %v526
        %v528 = vlaneseq
        %v529 = vshrl.u32 %v528, 7
        %v530 = vsub.s32 0, %v529
        %v531 = vrot.slane %v467, %v530
        %v532 = vlaneseq
        %v533 = vshrl.u32 %v532, 7
        %v534 = vsub.s32 0, %v533
        %v535 = vrot.slane %v469, %v534
        %v536 = vlaneseq
        %v537 = vshrl.u32 %v536, 7
        %v538 = vsub.s32 0, %v537
        %v539 = vrot.slane %v452, %v538
        %v540 = vlaneseq
        %v541 = vshrl.u32 %v540, 7
        %v542 = vsub.s32 0, %v541
        %v543 = vrot.slane %v466, %v542
        %v544 = vlaneseq
        %v545 = vshrl.u32 %v544, 7
        %v546 = vsub.s32 0, %v545
        %v547 = vrot.slane %v468, %v546
        %v548 = vlaneseq
        %v549 = vshrl.u32 %v548, 7
        %v550 = vsub.s32 0, %v549
        %v551 = vrot.slane %v470, %v550
        %v552 = vlaneseq
        %v553 = vshrl.u32 %v552, 7
        %v554 = vsub.s32 0, %v553
        %v555 = vrot.slane %v494, %v554
        %v556 = vlaneseq
        %v557 = vshrl.u32 %v556, 7
        %v558 = vsub.s32 0, %v557
        %v559 = vrot.slane %v508, %v558
        %v560 = vlaneseq
        %v561 = vshrl.u32 %v560, 7
        %v562 = vsub.s32 0, %v561
        %v563 = vrot.slane %v516, %v562
        %v564 = vlaneseq
        %v565 = vshrl.u32 %v564, 7
        %v566 = vsub.s32 0, %v565
        %v567 = vrot.slane %v518, %v566
        %v568 = vlaneseq
        %v569 = vshrl.u32 %v568, 7
        %v570 = vsub.s32 0, %v569
        %v571 = vrot.slane %v501, %v570
        %v572 = vlaneseq
        %v573 = vshrl.u32 %v572, 7
        %v574 = vsub.s32 0, %v573
        %v575 = vrot.slane %v515, %v574
        %v576 = vlaneseq
        %v577 = vshrl.u32 %v576, 7
        %v578 = vsub.s32 0, %v577
        %v579 = vrot.slane %v517, %v578
        %v580 = vlaneseq
        %v581 = vshrl.u32 %v580, 7
        %v582 = vsub.s32 0, %v581
        %v583 = vrot.slane %v519, %v582
        %v600 = vadd.f32 %v388, %v523
        %v601 = vadd.f32 %v389, %v523
        %v602 = vadd.f32 %v390, %v527
        %v603 = vadd.f32 %v391, %v527
        %v604 = vadd.f32 %v392, %v531
        %v605 = vadd.f32 %v393, %v531
        %v606 = vadd.f32 %v394, %v535
        %v607 = vadd.f32 %v395, %v535
        %v608 = vadd.f32 %v396, %v539
        %v609 = vadd.f32 %v397, %v539
        %v610 = vadd.f32 %v398, %v543
        %v611 = vadd.f32 %v399, %v543
        %v612 = vadd.f32 %v400, %v547
        %v613 = vadd.f32 %v401, %v547
        %v614 = vadd.f32 %v402, %v551
        %v615 = vadd.f32 %v403, %v551
        %v616 = vadd.f32 %v404, %v555
        %v617 = vadd.f32 %v405, %v555
        %v618 = vadd.f32 %v406, %v559
        %v619 = vadd.f32 %v407, %v559
        %v620 = vadd.f32 %v408, %v563
        %v621 = vadd.f32 %v409, %v563
        %v622 = vadd.f32 %v410, %v567
        %v623 = vadd.f32 %v411, %v567
        %v624 = vadd.f32 %v412, %v571
        %v625 = vadd.f32 %v413, %v571
        %v626 = vadd.f32 %v414, %v575
        %v627 = vadd.f32 %v415, %v575
        %v628 = vadd.f32 %v416, %v579
        %v629 = vadd.f32 %v417, %v579
        %v630 = vadd.f32 %v418, %v583
        %v631 = vadd.f32 %v419, %v583
        %v632 = vmax.f32 %v600, 0.0
        %v633 = vmax.f32 %v601, 0.0
        %v634 = vmax.f32 %v602, 0.0
        %v635 = vmax.f32 %v603, 0.0
        %v636 = vmax.f32 %v604, 0.0
        %v637 = vmax.f32 %v605, 0.0
        %v638 = vmax.f32 %v606, 0.0
        %v639 = vmax.f32 %v607, 0.0
        %v640 = vmax.f32 %v608, 0.0
        %v641 = vmax.f32 %v609, 0.0
        %v642 = vmax.f32 %v610, 0.0
        %v643 = vmax.f32 %v611, 0.0
        %v644 = vmax.f32 %v612, 0.0
        %v645 = vmax.f32 %v613, 0.0
        %v646 = vmax.f32 %v614, 0.0
        %v647 = vmax.f32 %v615, 0.0
        %v648 = vmax.f32 %v616, 0.0
        %v649 = vmax.f32 %v617, 0.0
        %v650 = vmax.f32 %v618, 0.0
        %v651 = vmax.f32 %v619, 0.0
        %v652 = vmax.f32 %v620, 0.0
        %v653 = vmax.f32 %v621, 0.0
        %v654 = vmax.f32 %v622, 0.0
        %v655 = vmax.f32 %v623, 0.0
        %v656 = vmax.f32 %v624, 0.0
        %v657 = vmax.f32 %v625, 0.0
        %v658 = vmax.f32 %v626, 0.0
        %v659 = vmax.f32 %v627, 0.0
        %v660 = vmax.f32 %v628, 0.0
        %v661 = vmax.f32 %v629, 0.0
        %v662 = vmax.f32 %v630, 0.0
        %v663 = vmax.f32 %v631, 0.0
        %v664 = vld [vmem:[%s3] sm:$0xff]
        %v665 = vld [vmem:[%s3 + $0x8] sm:$0xff]
        %v666 = vld [vmem:[%s3 + $0x10] sm:$0xff]
        %v667 = vld [vmem:[%s3 + $0x18] sm:$0xff]
        %v668 = vld [vmem:[%s4] sm:$0x1]
        %v670 = vlaneseq
        %v671 = vshrl.u32 %v670, 7
        %v672 = vsub.s32 0, %v671
        %v673 = vrot.slane %v668, %v672
        %vm675 = vcmask 261120
        %v677 = vsel %vm675, %v632, 0
        %v680 = vsel %vm675, %v633, 0
        %v683 = vsel %vm675, %v634, 0
        %v686 = vsel %vm675, %v635, 0
        %v689 = vsel %vm675, %v636, 0
        %v692 = vsel %vm675, %v637, 0
        %v695 = vsel %vm675, %v638, 0
        %v698 = vsel %vm675, %v639, 0
        %v701 = vsel %vm675, %v640, 0
        %v704 = vsel %vm675, %v641, 0
        %v707 = vsel %vm675, %v642, 0
        %v710 = vsel %vm675, %v643, 0
        %v713 = vsel %vm675, %v644, 0
        %v716 = vsel %vm675, %v645, 0
        %v719 = vsel %vm675, %v646, 0
        %v722 = vsel %vm675, %v647, 0
        %v725 = vsel %vm675, %v648, 0
        %v728 = vsel %vm675, %v649, 0
        %v731 = vsel %vm675, %v650, 0
        %v734 = vsel %vm675, %v651, 0
        %v737 = vsel %vm675, %v652, 0
        %v740 = vsel %vm675, %v653, 0
        %v743 = vsel %vm675, %v654, 0
        %v746 = vsel %vm675, %v655, 0
        %v749 = vsel %vm675, %v656, 0
        %v752 = vsel %vm675, %v657, 0
        %v755 = vsel %vm675, %v658, 0
        %v758 = vsel %vm675, %v659, 0
        %v761 = vsel %vm675, %v660, 0
        %v764 = vsel %vm675, %v661, 0
        %v767 = vsel %vm675, %v662, 0
        %v770 = vsel %vm675, %v663, 0
        %772 = vmatprep.subr.mxu0 0.0
        %773 = vmatpush1.msra.mxu0 %v664
        %774 = vmatprep.subr.mxu0 0.0
        %775 = vmatpush1.msra.mxu0 %v665
        %776 = vmatprep.subr.mxu0 0.0
        %777 = vmatpush1.msra.mxu0 %v666
        %778 = vmatprep.subr.mxu0 0.0
        %779 = vmatpush1.msra.mxu0 %v667
        %780 = vmatprep.subr.mxu0 0.0
        %781 = vmatpush1.msra.mxu0 0.0
        %782 = vmatprep.subr.mxu0 0.0
        %783 = vmatpush1.msra.mxu0 0.0
        %784 = vmatprep.subr.mxu0 0.0
        %785 = vmatpush1.msra.mxu0 0.0
        %786 = vmatprep.subr.mxu0 0.0
        %787 = vmatpush1.msra.mxu0 0.0
        %788 = vmatprep.subr.mxu0 0.0
        %789 = vmatpush1.msra.mxu0 0.0
        %790 = vmatprep.subr.mxu0 0.0
        %791 = vmatpush1.msra.mxu0 0.0
        %792 = vmatprep.subr.mxu0 0.0
        %793 = vmatpush1.msra.mxu0 0.0
        %794 = vmatprep.subr.mxu0 0.0
        %795 = vmatpush1.msra.mxu0 0.0
        %796 = vmatprep.subr.mxu0 0.0
        %797 = vmatpush1.msra.mxu0 0.0
        %798 = vmatprep.subr.mxu0 0.0
        %799 = vmatpush1.msra.mxu0 0.0
        %800 = vmatprep.subr.mxu0 0.0
        %801 = vmatpush1.msra.mxu0 0.0
        %802 = vmatprep.subr.mxu0 0.0
        %803 = vmatpush1.msra.mxu0 0.0
        %804 = vmatprep.subr.mxu0 0.0
        %805 = vmatpush1.msra.mxu0 0.0
        %806 = vmatprep.subr.mxu0 0.0
        %807 = vmatpush1.msra.mxu0 0.0
        %808 = vmatprep.subr.mxu0 0.0
        %809 = vmatpush1.msra.mxu0 0.0
        %810 = vmatprep.subr.mxu0 0.0
        %811 = vmatpush1.msra.mxu0 0.0
        %812 = vmatprep.subr.mxu0 0.0
        %813 = vmatpush1.msra.mxu0 0.0
        %814 = vmatprep.subr.mxu0 0.0
        %815 = vmatpush1.msra.mxu0 0.0
        %816 = vmatprep.subr.mxu0 0.0
        %817 = vmatpush1.msra.mxu0 0.0
        %818 = vmatprep.subr.mxu0 0.0
        %819 = vmatpush1.msra.mxu0 0.0
        %820 = vmatprep.subr.mxu0 0.0
        %821 = vmatpush1.msra.mxu0 0.0
        %822 = vmatprep.subr.mxu0 0.0
        %823 = vmatpush1.msra.mxu0 0.0
        %824 = vmatprep.subr.mxu0 0.0
        %825 = vmatpush1.msra.mxu0 0.0
        %826 = vmatprep.subr.mxu0 0.0
        %827 = vmatpush1.msra.mxu0 0.0
        %828 = vmatprep.subr.mxu0 0.0
        %829 = vmatpush1.msra.mxu0 0.0
        %830 = vmatprep.subr.mxu0 0.0
        %831 = vmatpush1.msra.mxu0 0.0
        %832 = vmatprep.subr.mxu0 0.0
        %833 = vmatpush1.msra.mxu0 0.0
        %834 = vmatprep.subr.mxu0 0.0
        %835 = vmatpush1.msra.mxu0 0.0
        %836 = vmatprep.mubr.f32.mxu0 0.0
        %837 = vmatmul.mubr.f32.gmra.mrb[0].mxu0 %v677
        %v838 = vpop.f32.mrb[0].mxu0
        %v839 = vadd.f32 %v673, %v838
        %v840 = vpop.f32.mrb[0].mxu0
        %841 = vmatprep.mubr.f32.mxu0 0.0
        %842 = vmatmul.mubr.f32.gmra.mrb[0].mxu0 %v680
        %v843 = vpop.f32.mrb[0].mxu0
        %v844 = vadd.f32 %v673, %v843
        %v845 = vpop.f32.mrb[0].mxu0
        %846 = vmatprep.mubr.f32.mxu0 0.0
        %847 = vmatmul.mubr.f32.gmra.mrb[0].mxu0 %v683
        %v848 = vpop.f32.mrb[0].mxu0
        %v849 = vadd.f32 %v673, %v848
        %v850 = vpop.f32.mrb[0].mxu0
        %851 = vmatprep.mubr.f32.mxu0 0.0
        %852 = vmatmul.mubr.f32.gmra.mrb[0].mxu0 %v686
        %v853 = vpop.f32.mrb[0].mxu0
        %v854 = vadd.f32 %v673, %v853
        %v855 = vpop.f32.mrb[0].mxu0
        %856 = vmatprep.mubr.f32.mxu0 0.0
        %857 = vmatmul.mubr.f32.gmra.mrb[0].mxu0 %v689
        %v858 = vpop.f32.mrb[0].mxu0
        %v859 = vadd.f32 %v673, %v858
        %v860 = vpop.f32.mrb[0].mxu0
        %861 = vmatprep.mubr.f32.mxu0 0.0
        %862 = vmatmul.mubr.f32.gmra.mrb[0].mxu0 %v692
        %v863 = vpop.f32.mrb[0].mxu0
        %v864 = vadd.f32 %v673, %v863
        %v865 = vpop.f32.mrb[0].mxu0
        %866 = vmatprep.mubr.f32.mxu0 0.0
        %867 = vmatmul.mubr.f32.gmra.mrb[0].mxu0 %v695
        %v868 = vpop.f32.mrb[0].mxu0
        %v869 = vadd.f32 %v673, %v868
        %v870 = vpop.f32.mrb[0].mxu0
        %871 = vmatprep.mubr.f32.mxu0 0.0
        %872 = vmatmul.mubr.f32.gmra.mrb[0].mxu0 %v698
        %v873 = vpop.f32.mrb[0].mxu0
        %v874 = vadd.f32 %v673, %v873
        %v875 = vpop.f32.mrb[0].mxu0
        %876 = vmatprep.mubr.f32.mxu0 0.0
        %877 = vmatmul.mubr.f32.gmra.mrb[0].mxu0 %v701
        %v878 = vpop.f32.mrb[0].mxu0
        %v879 = vadd.f32 %v673, %v878
        %v880 = vpop.f32.mrb[0].mxu0
        %881 = vmatprep.mubr.f32.mxu0 0.0
        %882 = vmatmul.mubr.f32.gmra.mrb[0].mxu0 %v704
        %v883 = vpop.f32.mrb[0].mxu0
        %v884 = vadd.f32 %v673, %v883
        %v885 = vpop.f32.mrb[0].mxu0
        %886 = vmatprep.mubr.f32.mxu0 0.0
        %887 = vmatmul.mubr.f32.gmra.mrb[0].mxu0 %v707
        %v888 = vpop.f32.mrb[0].mxu0
        %v889 = vadd.f32 %v673, %v888
        %v890 = vpop.f32.mrb[0].mxu0
        %891 = vmatprep.mubr.f32.mxu0 0.0
        %892 = vmatmul.mubr.f32.gmra.mrb[0].mxu0 %v710
        %v893 = vpop.f32.mrb[0].mxu0
        %v894 = vadd.f32 %v673, %v893
        %v895 = vpop.f32.mrb[0].mxu0
        %896 = vmatprep.mubr.f32.mxu0 0.0
        %897 = vmatmul.mubr.f32.gmra.mrb[0].mxu0 %v713
        %v898 = vpop.f32.mrb[0].mxu0
        %v899 = vadd.f32 %v673, %v898
        %v900 = vpop.f32.mrb[0].mxu0
        %901 = vmatprep.mubr.f32.mxu0 0.0
        %902 = vmatmul.mubr.f32.gmra.mrb[0].mxu0 %v716
        %v903 = vpop.f32.mrb[0].mxu0
        %v904 = vadd.f32 %v673, %v903
        %v905 = vpop.f32.mrb[0].mxu0
        %906 = vmatprep.mubr.f32.mxu0 0.0
        %907 = vmatmul.mubr.f32.gmra.mrb[0].mxu0 %v719
        %v908 = vpop.f32.mrb[0].mxu0
        %v909 = vadd.f32 %v673, %v908
        %v910 = vpop.f32.mrb[0].mxu0
        %911 = vmatprep.mubr.f32.mxu0 0.0
        %912 = vmatmul.mubr.f32.gmra.mrb[0].mxu0 %v722
        %v913 = vpop.f32.mrb[0].mxu0
        %v914 = vadd.f32 %v673, %v913
        %v915 = vpop.f32.mrb[0].mxu0
        %916 = vmatprep.mubr.f32.mxu0 0.0
        %917 = vmatmul.mubr.f32.gmra.mrb[0].mxu0 %v725
        %v918 = vpop.f32.mrb[0].mxu0
        %v919 = vadd.f32 %v673, %v918
        %v920 = vpop.f32.mrb[0].mxu0
        %921 = vmatprep.mubr.f32.mxu0 0.0
        %922 = vmatmul.mubr.f32.gmra.mrb[0].mxu0 %v728
        %v923 = vpop.f32.mrb[0].mxu0
        %v924 = vadd.f32 %v673, %v923
        %v925 = vpop.f32.mrb[0].mxu0
        %926 = vmatprep.mubr.f32.mxu0 0.0
        %927 = vmatmul.mubr.f32.gmra.mrb[0].mxu0 %v731
        %v928 = vpop.f32.mrb[0].mxu0
        %v929 = vadd.f32 %v673, %v928
        %v930 = vpop.f32.mrb[0].mxu0
        %931 = vmatprep.mubr.f32.mxu0 0.0
        %932 = vmatmul.mubr.f32.gmra.mrb[0].mxu0 %v734
        %v933 = vpop.f32.mrb[0].mxu0
        %v934 = vadd.f32 %v673, %v933
        %v935 = vpop.f32.mrb[0].mxu0
        %936 = vmatprep.mubr.f32.mxu0 0.0
        %937 = vmatmul.mubr.f32.gmra.mrb[0].mxu0 %v737
        %v938 = vpop.f32.mrb[0].mxu0
        %v939 = vadd.f32 %v673, %v938
        %v940 = vpop.f32.mrb[0].mxu0
        %941 = vmatprep.mubr.f32.mxu0 0.0
        %942 = vmatmul.mubr.f32.gmra.mrb[0].mxu0 %v740
        %v943 = vpop.f32.mrb[0].mxu0
        %v944 = vadd.f32 %v673, %v943
        %v945 = vpop.f32.mrb[0].mxu0
        %946 = vmatprep.mubr.f32.mxu0 0.0
        %947 = vmatmul.mubr.f32.gmra.mrb[0].mxu0 %v743
        %v948 = vpop.f32.mrb[0].mxu0
        %v949 = vadd.f32 %v673, %v948
        %v950 = vpop.f32.mrb[0].mxu0
        %951 = vmatprep.mubr.f32.mxu0 0.0
        %952 = vmatmul.mubr.f32.gmra.mrb[0].mxu0 %v746
        %v953 = vpop.f32.mrb[0].mxu0
        %v954 = vadd.f32 %v673, %v953
        %v955 = vpop.f32.mrb[0].mxu0
        %956 = vmatprep.mubr.f32.mxu0 0.0
        %957 = vmatmul.mubr.f32.gmra.mrb[0].mxu0 %v749
        %v958 = vpop.f32.mrb[0].mxu0
        %v959 = vadd.f32 %v673, %v958
        %v960 = vpop.f32.mrb[0].mxu0
        %961 = vmatprep.mubr.f32.mxu0 0.0
        %962 = vmatmul.mubr.f32.gmra.mrb[0].mxu0 %v752
        %v963 = vpop.f32.mrb[0].mxu0
        %v964 = vadd.f32 %v673, %v963
        %v965 = vpop.f32.mrb[0].mxu0
        %966 = vmatprep.mubr.f32.mxu0 0.0
        %967 = vmatmul.mubr.f32.gmra.mrb[0].mxu0 %v755
        %v968 = vpop.f32.mrb[0].mxu0
        %v969 = vadd.f32 %v673, %v968
        %v970 = vpop.f32.mrb[0].mxu0
        %971 = vmatprep.mubr.f32.mxu0 0.0
        %972 = vmatmul.mubr.f32.gmra.mrb[0].mxu0 %v758
        %v973 = vpop.f32.mrb[0].mxu0
        %v974 = vadd.f32 %v673, %v973
        %v975 = vpop.f32.mrb[0].mxu0
        %976 = vmatprep.mubr.f32.mxu0 0.0
        %977 = vmatmul.mubr.f32.gmra.mrb[0].mxu0 %v761
        %v978 = vpop.f32.mrb[0].mxu0
        %v979 = vadd.f32 %v673, %v978
        %v980 = vpop.f32.mrb[0].mxu0
        %981 = vmatprep.mubr.f32.mxu0 0.0
        %982 = vmatmul.mubr.f32.gmra.mrb[0].mxu0 %v764
        %v983 = vpop.f32.mrb[0].mxu0
        %v984 = vadd.f32 %v673, %v983
        %v985 = vpop.f32.mrb[0].mxu0
        %986 = vmatprep.mubr.f32.mxu0 0.0
        %987 = vmatmul.mubr.f32.gmra.mrb[0].mxu0 %v767
        %v988 = vpop.f32.mrb[0].mxu0
        %v989 = vadd.f32 %v673, %v988
        %v990 = vpop.f32.mrb[0].mxu0
        %991 = vmatprep.mubr.f32.mxu0 0.0
        %992 = vmatmul.mubr.f32.gmra.mrb[0].mxu0 %v770
        %v993 = vpop.f32.mrb[0].mxu0
        %v994 = vadd.f32 %v673, %v993
        %v995 = vpop.f32.mrb[0].mxu0
        %996 = vdwg.mxu0
        %v997 = vmax.f32 %v839, 0.0
        %v998 = vmax.f32 %v844, 0.0
        %v999 = vmax.f32 %v849, 0.0
        %v1000 = vmax.f32 %v854, 0.0
        %v1001 = vmax.f32 %v859, 0.0
        %v1002 = vmax.f32 %v864, 0.0
        %v1003 = vmax.f32 %v869, 0.0
        %v1004 = vmax.f32 %v874, 0.0
        %v1005 = vmax.f32 %v879, 0.0
        %v1006 = vmax.f32 %v884, 0.0
        %v1007 = vmax.f32 %v889, 0.0
        %v1008 = vmax.f32 %v894, 0.0
        %v1009 = vmax.f32 %v899, 0.0
        %v1010 = vmax.f32 %v904, 0.0
        %v1011 = vmax.f32 %v909, 0.0
        %v1012 = vmax.f32 %v914, 0.0
        %v1013 = vmax.f32 %v919, 0.0
        %v1014 = vmax.f32 %v924, 0.0
        %v1015 = vmax.f32 %v929, 0.0
        %v1016 = vmax.f32 %v934, 0.0
        %v1017 = vmax.f32 %v939, 0.0
        %v1018 = vmax.f32 %v944, 0.0
        %v1019 = vmax.f32 %v949, 0.0
        %v1020 = vmax.f32 %v954, 0.0
        %v1021 = vmax.f32 %v959, 0.0
        %v1022 = vmax.f32 %v964, 0.0
        %v1023 = vmax.f32 %v969, 0.0
        %v1024 = vmax.f32 %v974, 0.0
        %v1025 = vmax.f32 %v979, 0.0
        %v1026 = vmax.f32 %v984, 0.0
        %v1027 = vmax.f32 %v989, 0.0
        %v1028 = vmax.f32 %v994, 0.0
        %v1029 = vld [vmem:[%s5] sm:$0xff]
        %v1030 = vld [vmem:[%s5 + $0x8] sm:$0xff]
        %v1031 = vld [vmem:[%s5 + $0x10] sm:$0xff]
        %v1032 = vld [vmem:[%s5 + $0x18] sm:$0xff]
        %v1033 = vld [vmem:[%s6] sm:$0x1]
        %v1035 = vlaneseq
        %v1036 = vshrl.u32 %v1035, 7
        %v1037 = vsub.s32 0, %v1036
        %v1038 = vrot.slane %v1033, %v1037
        %v1041 = vsel %vm675, %v997, 0
        %v1044 = vsel %vm675, %v998, 0
        %v1047 = vsel %vm675, %v999, 0
        %v1050 = vsel %vm675, %v1000, 0
        %v1053 = vsel %vm675, %v1001, 0
        %v1056 = vsel %vm675, %v1002, 0
        %v1059 = vsel %vm675, %v1003, 0
        %v1062 = vsel %vm675, %v1004, 0
        %v1065 = vsel %vm675, %v1005, 0
        %v1068 = vsel %vm675, %v1006, 0
        %v1071 = vsel %vm675, %v1007, 0
        %v1074 = vsel %vm675, %v1008, 0
        %v1077 = vsel %vm675, %v1009, 0
        %v1080 = vsel %vm675, %v1010, 0
        %v1083 = vsel %vm675, %v1011, 0
        %v1086 = vsel %vm675, %v1012, 0
        %v1089 = vsel %vm675, %v1013, 0
        %v1092 = vsel %vm675, %v1014, 0
        %v1095 = vsel %vm675, %v1015, 0
        %v1098 = vsel %vm675, %v1016, 0
        %v1101 = vsel %vm675, %v1017, 0
        %v1104 = vsel %vm675, %v1018, 0
        %v1107 = vsel %vm675, %v1019, 0
        %v1110 = vsel %vm675, %v1020, 0
        %v1113 = vsel %vm675, %v1021, 0
        %v1116 = vsel %vm675, %v1022, 0
        %v1119 = vsel %vm675, %v1023, 0
        %v1122 = vsel %vm675, %v1024, 0
        %v1125 = vsel %vm675, %v1025, 0
        %v1128 = vsel %vm675, %v1026, 0
        %v1131 = vsel %vm675, %v1027, 0
        %v1134 = vsel %vm675, %v1028, 0
        %1136 = vmatprep.subr.mxu0 0.0
        %1137 = vmatpush1.msra.mxu0 %v1029
        %1138 = vmatprep.subr.mxu0 0.0
        %1139 = vmatpush1.msra.mxu0 %v1030
        %1140 = vmatprep.subr.mxu0 0.0
        %1141 = vmatpush1.msra.mxu0 %v1031
        %1142 = vmatprep.subr.mxu0 0.0
        %1143 = vmatpush1.msra.mxu0 %v1032
        %1144 = vmatprep.subr.mxu0 0.0
        %1145 = vmatpush1.msra.mxu0 0.0
        %1146 = vmatprep.subr.mxu0 0.0
        %1147 = vmatpush1.msra.mxu0 0.0
        %1148 = vmatprep.subr.mxu0 0.0
        %1149 = vmatpush1.msra.mxu0 0.0
        %1150 = vmatprep.subr.mxu0 0.0
        %1151 = vmatpush1.msra.mxu0 0.0
        %1152 = vmatprep.subr.mxu0 0.0
        %1153 = vmatpush1.msra.mxu0 0.0
        %1154 = vmatprep.subr.mxu0 0.0
        %1155 = vmatpush1.msra.mxu0 0.0
        %1156 = vmatprep.subr.mxu0 0.0
        %1157 = vmatpush1.msra.mxu0 0.0
        %1158 = vmatprep.subr.mxu0 0.0
        %1159 = vmatpush1.msra.mxu0 0.0
        %1160 = vmatprep.subr.mxu0 0.0
        %1161 = vmatpush1.msra.mxu0 0.0
        %1162 = vmatprep.subr.mxu0 0.0
        %1163 = vmatpush1.msra.mxu0 0.0
        %1164 = vmatprep.subr.mxu0 0.0
        %1165 = vmatpush1.msra.mxu0 0.0
        %1166 = vmatprep.subr.mxu0 0.0
        %1167 = vmatpush1.msra.mxu0 0.0
        %1168 = vmatprep.subr.mxu0 0.0
        %1169 = vmatpush1.msra.mxu0 0.0
        %1170 = vmatprep.subr.mxu0 0.0
        %1171 = vmatpush1.msra.mxu0 0.0
        %1172 = vmatprep.subr.mxu0 0.0
        %1173 = vmatpush1.msra.mxu0 0.0
        %1174 = vmatprep.subr.mxu0 0.0
        %1175 = vmatpush1.msra.mxu0 0.0
        %1176 = vmatprep.subr.mxu0 0.0
        %1177 = vmatpush1.msra.mxu0 0.0
        %1178 = vmatprep.subr.mxu0 0.0
        %1179 = vmatpush1.msra.mxu0 0.0
        %1180 = vmatprep.subr.mxu0 0.0
        %1181 = vmatpush1.msra.mxu0 0.0
        %1182 = vmatprep.subr.mxu0 0.0
        %1183 = vmatpush1.msra.mxu0 0.0
        %1184 = vmatprep.subr.mxu0 0.0
        %1185 = vmatpush1.msra.mxu0 0.0
        %1186 = vmatprep.subr.mxu0 0.0
        %1187 = vmatpush1.msra.mxu0 0.0
        %1188 = vmatprep.subr.mxu0 0.0
        %1189 = vmatpush1.msra.mxu0 0.0
        %1190 = vmatprep.subr.mxu0 0.0
        %1191 = vmatpush1.msra.mxu0 0.0
        %1192 = vmatprep.subr.mxu0 0.0
        %1193 = vmatpush1.msra.mxu0 0.0
        %1194 = vmatprep.subr.mxu0 0.0
        %1195 = vmatpush1.msra.mxu0 0.0
        %1196 = vmatprep.subr.mxu0 0.0
        %1197 = vmatpush1.msra.mxu0 0.0
        %1198 = vmatprep.subr.mxu0 0.0
        %1199 = vmatpush1.msra.mxu0 0.0
        %1200 = vmatprep.mubr.f32.mxu0 0.0
        %1201 = vmatmul.mubr.f32.gmra.mrb[0].mxu0 %v1041
        %v1202 = vpop.f32.mrb[0].mxu0
        %v1203 = vadd.f32 %v1038, %v1202
        %v1204 = vpop.f32.mrb[0].mxu0
        %1205 = vmatprep.mubr.f32.mxu0 0.0
        %1206 = vmatmul.mubr.f32.gmra.mrb[0].mxu0 %v1044
        %v1207 = vpop.f32.mrb[0].mxu0
        %v1208 = vadd.f32 %v1038, %v1207
        %v1209 = vpop.f32.mrb[0].mxu0
        %1210 = vmatprep.mubr.f32.mxu0 0.0
        %1211 = vmatmul.mubr.f32.gmra.mrb[0].mxu0 %v1047
        %v1212 = vpop.f32.mrb[0].mxu0
        %v1213 = vadd.f32 %v1038, %v1212
        %v1214 = vpop.f32.mrb[0].mxu0
        %1215 = vmatprep.mubr.f32.mxu0 0.0
        %1216 = vmatmul.mubr.f32.gmra.mrb[0].mxu0 %v1050
        %v1217 = vpop.f32.mrb[0].mxu0
        %v1218 = vadd.f32 %v1038, %v1217
        %v1219 = vpop.f32.mrb[0].mxu0
        %1220 = vmatprep.mubr.f32.mxu0 0.0
        %1221 = vmatmul.mubr.f32.gmra.mrb[0].mxu0 %v1053
        %v1222 = vpop.f32.mrb[0].mxu0
        %v1223 = vadd.f32 %v1038, %v1222
        %v1224 = vpop.f32.mrb[0].mxu0
        %1225 = vmatprep.mubr.f32.mxu0 0.0
        %1226 = vmatmul.mubr.f32.gmra.mrb[0].mxu0 %v1056
        %v1227 = vpop.f32.mrb[0].mxu0
        %v1228 = vadd.f32 %v1038, %v1227
        %v1229 = vpop.f32.mrb[0].mxu0
        %1230 = vmatprep.mubr.f32.mxu0 0.0
        %1231 = vmatmul.mubr.f32.gmra.mrb[0].mxu0 %v1059
        %v1232 = vpop.f32.mrb[0].mxu0
        %v1233 = vadd.f32 %v1038, %v1232
        %v1234 = vpop.f32.mrb[0].mxu0
        %1235 = vmatprep.mubr.f32.mxu0 0.0
        %1236 = vmatmul.mubr.f32.gmra.mrb[0].mxu0 %v1062
        %v1237 = vpop.f32.mrb[0].mxu0
        %v1238 = vadd.f32 %v1038, %v1237
        %v1239 = vpop.f32.mrb[0].mxu0
        %1240 = vmatprep.mubr.f32.mxu0 0.0
        %1241 = vmatmul.mubr.f32.gmra.mrb[0].mxu0 %v1065
        %v1242 = vpop.f32.mrb[0].mxu0
        %v1243 = vadd.f32 %v1038, %v1242
        %v1244 = vpop.f32.mrb[0].mxu0
        %1245 = vmatprep.mubr.f32.mxu0 0.0
        %1246 = vmatmul.mubr.f32.gmra.mrb[0].mxu0 %v1068
        %v1247 = vpop.f32.mrb[0].mxu0
        %v1248 = vadd.f32 %v1038, %v1247
        %v1249 = vpop.f32.mrb[0].mxu0
        %1250 = vmatprep.mubr.f32.mxu0 0.0
        %1251 = vmatmul.mubr.f32.gmra.mrb[0].mxu0 %v1071
        %v1252 = vpop.f32.mrb[0].mxu0
        %v1253 = vadd.f32 %v1038, %v1252
        %v1254 = vpop.f32.mrb[0].mxu0
        %1255 = vmatprep.mubr.f32.mxu0 0.0
        %1256 = vmatmul.mubr.f32.gmra.mrb[0].mxu0 %v1074
        %v1257 = vpop.f32.mrb[0].mxu0
        %v1258 = vadd.f32 %v1038, %v1257
        %v1259 = vpop.f32.mrb[0].mxu0
        %1260 = vmatprep.mubr.f32.mxu0 0.0
        %1261 = vmatmul.mubr.f32.gmra.mrb[0].mxu0 %v1077
        %v1262 = vpop.f32.mrb[0].mxu0
        %v1263 = vadd.f32 %v1038, %v1262
        %v1264 = vpop.f32.mrb[0].mxu0
        %1265 = vmatprep.mubr.f32.mxu0 0.0
        %1266 = vmatmul.mubr.f32.gmra.mrb[0].mxu0 %v1080
        %v1267 = vpop.f32.mrb[0].mxu0
        %v1268 = vadd.f32 %v1038, %v1267
        %v1269 = vpop.f32.mrb[0].mxu0
        %1270 = vmatprep.mubr.f32.mxu0 0.0
        %1271 = vmatmul.mubr.f32.gmra.mrb[0].mxu0 %v1083
        %v1272 = vpop.f32.mrb[0].mxu0
        %v1273 = vadd.f32 %v1038, %v1272
        %v1274 = vpop.f32.mrb[0].mxu0
        %1275 = vmatprep.mubr.f32.mxu0 0.0
        %1276 = vmatmul.mubr.f32.gmra.mrb[0].mxu0 %v1086
        %v1277 = vpop.f32.mrb[0].mxu0
        %v1278 = vadd.f32 %v1038, %v1277
        %v1279 = vpop.f32.mrb[0].mxu0
        %1280 = vmatprep.mubr.f32.mxu0 0.0
        %1281 = vmatmul.mubr.f32.gmra.mrb[0].mxu0 %v1089
        %v1282 = vpop.f32.mrb[0].mxu0
        %v1283 = vadd.f32 %v1038, %v1282
        %v1284 = vpop.f32.mrb[0].mxu0
        %1285 = vmatprep.mubr.f32.mxu0 0.0
        %1286 = vmatmul.mubr.f32.gmra.mrb[0].mxu0 %v1092
        %v1287 = vpop.f32.mrb[0].mxu0
        %v1288 = vadd.f32 %v1038, %v1287
        %v1289 = vpop.f32.mrb[0].mxu0
        %1290 = vmatprep.mubr.f32.mxu0 0.0
        %1291 = vmatmul.mubr.f32.gmra.mrb[0].mxu0 %v1095
        %v1292 = vpop.f32.mrb[0].mxu0
        %v1293 = vadd.f32 %v1038, %v1292
        %v1294 = vpop.f32.mrb[0].mxu0
        %1295 = vmatprep.mubr.f32.mxu0 0.0
        %1296 = vmatmul.mubr.f32.gmra.mrb[0].mxu0 %v1098
        %v1297 = vpop.f32.mrb[0].mxu0
        %v1298 = vadd.f32 %v1038, %v1297
        %v1299 = vpop.f32.mrb[0].mxu0
        %1300 = vmatprep.mubr.f32.mxu0 0.0
        %1301 = vmatmul.mubr.f32.gmra.mrb[0].mxu0 %v1101
        %v1302 = vpop.f32.mrb[0].mxu0
        %v1303 = vadd.f32 %v1038, %v1302
        %v1304 = vpop.f32.mrb[0].mxu0
        %1305 = vmatprep.mubr.f32.mxu0 0.0
        %1306 = vmatmul.mubr.f32.gmra.mrb[0].mxu0 %v1104
        %v1307 = vpop.f32.mrb[0].mxu0
        %v1308 = vadd.f32 %v1038, %v1307
        %v1309 = vpop.f32.mrb[0].mxu0
        %1310 = vmatprep.mubr.f32.mxu0 0.0
        %1311 = vmatmul.mubr.f32.gmra.mrb[0].mxu0 %v1107
        %v1312 = vpop.f32.mrb[0].mxu0
        %v1313 = vadd.f32 %v1038, %v1312
        %v1314 = vpop.f32.mrb[0].mxu0
        %1315 = vmatprep.mubr.f32.mxu0 0.0
        %1316 = vmatmul.mubr.f32.gmra.mrb[0].mxu0 %v1110
        %v1317 = vpop.f32.mrb[0].mxu0
        %v1318 = vadd.f32 %v1038, %v1317
        %v1319 = vpop.f32.mrb[0].mxu0
        %1320 = vmatprep.mubr.f32.mxu0 0.0
        %1321 = vmatmul.mubr.f32.gmra.mrb[0].mxu0 %v1113
        %v1322 = vpop.f32.mrb[0].mxu0
        %v1323 = vadd.f32 %v1038, %v1322
        %v1324 = vpop.f32.mrb[0].mxu0
        %1325 = vmatprep.mubr.f32.mxu0 0.0
        %1326 = vmatmul.mubr.f32.gmra.mrb[0].mxu0 %v1116
        %v1327 = vpop.f32.mrb[0].mxu0
        %v1328 = vadd.f32 %v1038, %v1327
        %v1329 = vpop.f32.mrb[0].mxu0
        %1330 = vmatprep.mubr.f32.mxu0 0.0
        %1331 = vmatmul.mubr.f32.gmra.mrb[0].mxu0 %v1119
        %v1332 = vpop.f32.mrb[0].mxu0
        %v1333 = vadd.f32 %v1038, %v1332
        %v1334 = vpop.f32.mrb[0].mxu0
        %1335 = vmatprep.mubr.f32.mxu0 0.0
        %1336 = vmatmul.mubr.f32.gmra.mrb[0].mxu0 %v1122
        %v1337 = vpop.f32.mrb[0].mxu0
        %v1338 = vadd.f32 %v1038, %v1337
        %v1339 = vpop.f32.mrb[0].mxu0
        %1340 = vmatprep.mubr.f32.mxu0 0.0
        %1341 = vmatmul.mubr.f32.gmra.mrb[0].mxu0 %v1125
        %v1342 = vpop.f32.mrb[0].mxu0
        %v1343 = vadd.f32 %v1038, %v1342
        %v1344 = vpop.f32.mrb[0].mxu0
        %1345 = vmatprep.mubr.f32.mxu0 0.0
        %1346 = vmatmul.mubr.f32.gmra.mrb[0].mxu0 %v1128
        %v1347 = vpop.f32.mrb[0].mxu0
        %v1348 = vadd.f32 %v1038, %v1347
        %v1349 = vpop.f32.mrb[0].mxu0
        %1350 = vmatprep.mubr.f32.mxu0 0.0
        %1351 = vmatmul.mubr.f32.gmra.mrb[0].mxu0 %v1131
        %v1352 = vpop.f32.mrb[0].mxu0
        %v1353 = vadd.f32 %v1038, %v1352
        %v1354 = vpop.f32.mrb[0].mxu0
        %1355 = vmatprep.mubr.f32.mxu0 0.0
        %1356 = vmatmul.mubr.f32.gmra.mrb[0].mxu0 %v1134
        %v1357 = vpop.f32.mrb[0].mxu0
        %v1358 = vadd.f32 %v1038, %v1357
        %v1359 = vpop.f32.mrb[0].mxu0
        %1360 = vdwg.mxu0
        %v1361 = vmax.f32 %v1203, 0.0
        %v1362 = vmax.f32 %v1208, 0.0
        %v1363 = vmax.f32 %v1213, 0.0
        %v1364 = vmax.f32 %v1218, 0.0
        %v1365 = vmax.f32 %v1223, 0.0
        %v1366 = vmax.f32 %v1228, 0.0
        %v1367 = vmax.f32 %v1233, 0.0
        %v1368 = vmax.f32 %v1238, 0.0
        %v1369 = vmax.f32 %v1243, 0.0
        %v1370 = vmax.f32 %v1248, 0.0
        %v1371 = vmax.f32 %v1253, 0.0
        %v1372 = vmax.f32 %v1258, 0.0
        %v1373 = vmax.f32 %v1263, 0.0
        %v1374 = vmax.f32 %v1268, 0.0
        %v1375 = vmax.f32 %v1273, 0.0
        %v1376 = vmax.f32 %v1278, 0.0
        %v1377 = vmax.f32 %v1283, 0.0
        %v1378 = vmax.f32 %v1288, 0.0
        %v1379 = vmax.f32 %v1293, 0.0
        %v1380 = vmax.f32 %v1298, 0.0
        %v1381 = vmax.f32 %v1303, 0.0
        %v1382 = vmax.f32 %v1308, 0.0
        %v1383 = vmax.f32 %v1313, 0.0
        %v1384 = vmax.f32 %v1318, 0.0
        %v1385 = vmax.f32 %v1323, 0.0
        %v1386 = vmax.f32 %v1328, 0.0
        %v1387 = vmax.f32 %v1333, 0.0
        %v1388 = vmax.f32 %v1338, 0.0
        %v1389 = vmax.f32 %v1343, 0.0
        %v1390 = vmax.f32 %v1348, 0.0
        %v1391 = vmax.f32 %v1353, 0.0
        %v1392 = vmax.f32 %v1358, 0.0
        %v1393 = vld [vmem:[#allocation2] sm:$0xff]
        %v1394 = vsel %vm675, %v1361, 0.0
        %v1395 = vsel %vm675, %v1362, 0.0
        %v1396 = vadd.f32 %v1394, %v1395
        %v1397 = vsel %vm675, %v1363, 0.0
        %v1398 = vadd.f32 %v1396, %v1397
        %v1399 = vsel %vm675, %v1364, 0.0
        %v1400 = vadd.f32 %v1398, %v1399
        %v1401 = vsel %vm675, %v1365, 0.0
        %v1402 = vadd.f32 %v1400, %v1401
        %v1403 = vsel %vm675, %v1366, 0.0
        %v1404 = vadd.f32 %v1402, %v1403
        %v1405 = vsel %vm675, %v1367, 0.0
        %v1406 = vadd.f32 %v1404, %v1405
        %v1407 = vsel %vm675, %v1368, 0.0
        %v1408 = vadd.f32 %v1406, %v1407
        %v1409 = vsel %vm675, %v1369, 0.0
        %v1410 = vadd.f32 %v1408, %v1409
        %v1411 = vsel %vm675, %v1370, 0.0
        %v1412 = vadd.f32 %v1410, %v1411
        %v1413 = vsel %vm675, %v1371, 0.0
        %v1414 = vadd.f32 %v1412, %v1413
        %v1415 = vsel %vm675, %v1372, 0.0
        %v1416 = vadd.f32 %v1414, %v1415
        %v1417 = vsel %vm675, %v1373, 0.0
        %v1418 = vadd.f32 %v1416, %v1417
        %v1419 = vsel %vm675, %v1374, 0.0
        %v1420 = vadd.f32 %v1418, %v1419
        %v1421 = vsel %vm675, %v1375, 0.0
        %v1422 = vadd.f32 %v1420, %v1421
        %v1423 = vsel %vm675, %v1376, 0.0
        %v1424 = vadd.f32 %v1422, %v1423
        %v1425 = vsel %vm675, %v1377, 0.0
        %v1426 = vadd.f32 %v1424, %v1425
        %v1427 = vsel %vm675, %v1378, 0.0
        %v1428 = vadd.f32 %v1426, %v1427
        %v1429 = vsel %vm675, %v1379, 0.0
        %v1430 = vadd.f32 %v1428, %v1429
        %v1431 = vsel %vm675, %v1380, 0.0
        %v1432 = vadd.f32 %v1430, %v1431
        %v1433 = vsel %vm675, %v1381, 0.0
        %v1434 = vadd.f32 %v1432, %v1433
        %v1435 = vsel %vm675, %v1382, 0.0
        %v1436 = vadd.f32 %v1434, %v1435
        %v1437 = vsel %vm675, %v1383, 0.0
        %v1438 = vadd.f32 %v1436, %v1437
        %v1439 = vsel %vm675, %v1384, 0.0
        %v1440 = vadd.f32 %v1438, %v1439
        %v1441 = vsel %vm675, %v1385, 0.0
        %v1442 = vadd.f32 %v1440, %v1441
        %v1443 = vsel %vm675, %v1386, 0.0
        %v1444 = vadd.f32 %v1442, %v1443
        %v1445 = vsel %vm675, %v1387, 0.0
        %v1446 = vadd.f32 %v1444, %v1445
        %v1447 = vsel %vm675, %v1388, 0.0
        %v1448 = vadd.f32 %v1446, %v1447
        %v1449 = vsel %vm675, %v1389, 0.0
        %v1450 = vadd.f32 %v1448, %v1449
        %v1451 = vsel %vm675, %v1390, 0.0
        %v1452 = vadd.f32 %v1450, %v1451
        %v1453 = vsel %vm675, %v1391, 0.0
        %v1454 = vadd.f32 %v1452, %v1453
        %v1455 = vsel %vm675, %v1392, 0.0
        %v1456 = vadd.f32 %v1454, %v1455
        %v1457 = vadd.f32 %v1393, %v1456
        %1458 = vst.msk [vmem:[#allocation2] sm:$0xff] %vm675, %v1457
        // Predicated region
        $region53: #{tpu_custom_call.1} parent=47 // pred_check
          %p1459 = pneg %p346
        $region54: #{tpu_custom_call.1} parent=47 // pred_check_branch
          %1461 = sbr.rel (%p1459) target = $region56
        $region55: #{tpu_custom_call.1} parent=47 // pred_region
          %v1462 = vld [vmem:[#allocation2] sm:$0xff]
          %v1463 = vsel %vm675, %v1462, 0.0
          %v1464 = vrot.slane %v1463, 4
          %v1465 = vadd.f32 %v1463, %v1464
          %v1466 = vrot.slane %v1465, 2
          %v1467 = vadd.f32 %v1465, %v1466
          %v1468 = vrot.slane %v1467, 1
          %v1469 = vadd.f32 %v1467, %v1468
          %vm1470 = vcmask 253952
          %1471 = vst.msk [vmem:[%s324] sm:$0x1] %vm1470, %v1469
        $region56: #{tpu_custom_call.1} parent=47 // pred_fallthru
          _
        %s1472 = sand.u32 %s205, 1
        %s1473 = scalar_lea.sflag [#allocation4], %s1472
        %s1474 = sand.u32 %s205, 1
        %s1475 = scalar_lea.vmem [#allocation3], %s1474
        // Predicated region
        $region57: #{tpu_custom_call.1} parent=47 // pred_check
          %p1476 = pneg %p215
        $region58: #{tpu_custom_call.1} parent=47 // pred_check_branch
          %1478 = sbr.rel (%p1476) target = $region60
        $region59: #{tpu_custom_call.1} parent=47 // pred_region
          %s1480 = ssub.s32 16, 16
          %1481 = vsyncadd %s1473, %s1480
          %s1482 = smul.addr %s25, 16
          %s1483 = scalar_lea.hbm %s7, %s1482
          %s1485 = sshll.u32 %s1475, 4
          %s1486 = int_to_ptr.vmem [resolvable:$true] %s1485
          %1488 = dma.vmem_to_hbm [thread:$0]  %s1486, 16, %s1483, %s1473
        $region60: #{tpu_custom_call.1} parent=47 // pred_fallthru
          _
      $region48: #{tpu_custom_call.1} parent=5 // pred_fallthru
        _
      %p1489 = scmp.le.s32.totalorder 2, %s16
      // Predicated region
      $region61: #{tpu_custom_call.1} parent=5 // pred_check
        %p1490 = pneg %p1489
      $region62: #{tpu_custom_call.1} parent=5 // pred_check_branch
        %1492 = sbr.rel (%p1490) target = $region64
      $region63: #{tpu_custom_call.1} parent=5 // pred_region
        %s1493 = ssub.s32 %s16, 2
        // Predicated region
        $region65: #{tpu_custom_call.1} parent=63 // pred_check
          %p1494 = pneg %p221
        $region66: #{tpu_custom_call.1} parent=63 // pred_check_branch
          %1496 = sbr.rel (%p1494) target = $region68
        $region67: #{tpu_custom_call.1} parent=63 // pred_region
          %s1497 = sand.u32 %s206, 1
          %s1498 = scalar_lea.sflag [#allocation4], %s1497
          %s1499 = sand.u32 %s206, 1
          %s1500 = scalar_lea.vmem [#allocation3], %s1499
          %1501 = dma.done %s1498, 16
        $region68: #{tpu_custom_call.1} parent=63 // pred_fallthru
          _
      $region64: #{tpu_custom_call.1} parent=5 // pred_fallthru
        _
    $region6: #{tpu_custom_call.1} parent=1 // loop_footer
      %s20 = sadd.s32 1, %s16
    $region7: #{tpu_custom_call.1} parent=1 // loop_footer_branch
      %15 = sbr.rel target = $region3
    $region8: #{tpu_custom_call.1} parent=1 // loop_exit
      _
    %1502 = vsyncpa [#allocation4], 1
    %s1503 = scalar_lea.sflag [#allocation4], 1
    %1504 = vsyncpa %s1503, 1

</llo_original>
